<compile_context>
chip_gen: v6e
topology: v6e:2x2x1
jax: 0.10.0
libtpu: 0.0.40
codegen_flags: <defaults>
</compile_context>

<pallas_src>
import functools
import math

import jax
import jax.numpy as jnp
from jax.experimental import pallas as pl
from jax.experimental.pallas import tpu as pltpu


def _round_up(a, b):
    return (a + b - 1) // b * b


def _cdiv(a, b):
    return (a + b - 1) // b


# ----------------------------------------------------------------------------
# In-kernel math helpers.
# ----------------------------------------------------------------------------
def _gelu_tanh(x):
    # tanh-approximate GELU: single transcendental -> EUP slot instead of a
    # ~10-op VALU erf polynomial.  Max abs error vs exact-erf GELU ~3e-4.
    c = math.sqrt(2.0 / math.pi)
    return 0.5 * x * (1.0 + jnp.tanh(c * (x + 0.044715 * x * x * x)))


def _layer_norm(v, gamma, beta, eps):
    # TF-style LayerNorm (epsilon inside the square root), rsqrt -> EUP.
    u = jnp.mean(v, axis=-1, keepdims=True)
    d = v - u
    s = jnp.mean(d * d, axis=-1, keepdims=True)
    return gamma * (d * jax.lax.rsqrt(s + eps)) + beta


# ----------------------------------------------------------------------------
# Fused post-attention kernel: proj + add&norm1 + FFN(GELU) + add&norm2.
# ----------------------------------------------------------------------------
def _fourier_block_kernel(x_ref, a_ref, wp_ref, w1_ref, w2_ref, vec_ref,
                          o_ref, *, eps, hidden, hidden_ff, ff_chunk):
    H, Hff = hidden, hidden_ff

    # Packed bias/gamma/beta vectors (one resident (8, Vmax) f32 block).
    vec = vec_ref[...].astype(jnp.float32)
    bp, g1, bt1 = vec[0:1, :H], vec[1:2, :H], vec[2:3, :H]
    bf2, g2, bt2 = vec[3:4, :H], vec[4:5, :H], vec[5:6, :H]
    # row 6 holds fc1 bias (length Hff) -- sliced per FFN chunk below.

    xf = x_ref[...].astype(jnp.float32)

    # h1 = norm1(x + attn @ Wp + bp)        (bf16 x bf16 -> f32 on the MXU)
    p = jnp.dot(a_ref[...], wp_ref[...], preferred_element_type=jnp.float32)
    h1 = _layer_norm(xf + p + bp, g1, bt1, eps)
    h1_b = h1.astype(w1_ref.dtype)

    # Position-wise FFN blocked over the hidden_ff axis so the (tm, ff_chunk)
    # intermediates stay bounded regardless of Hff.
    f = jnp.zeros_like(h1)
    for c in range(Hff // ff_chunk):
        c0 = c * ff_chunk
        u = jnp.dot(h1_b, w1_ref[:, c0:c0 + ff_chunk],
                    preferred_element_type=jnp.float32)
        u = u + vec[6:7, c0:c0 + ff_chunk]
        g = _gelu_tanh(u).astype(w2_ref.dtype)
        f = f + jnp.dot(g, w2_ref[c0:c0 + ff_chunk, :],
                        preferred_element_type=jnp.float32)
    f = f + bf2

    # out = norm2(h1 + ffn)
    o_ref[...] = _layer_norm(h1 + f, g2, bt2, eps).astype(o_ref.dtype)


# ----------------------------------------------------------------------------
# Attention stand-in (plain JAX, DFT-as-matmul -> MXU, no complex FFT).
# ----------------------------------------------------------------------------
def _dft_mats(n, dtype=jnp.float32):
    k = jnp.arange(n, dtype=jnp.int32)
    idx = (k[:, None] * k[None, :]) % n          # exact integer phase index
    ang = (2.0 * jnp.pi / n) * idx.astype(dtype)
    return jnp.cos(ang), jnp.sin(ang)


def _fourier_attention_standin(x, mask):
    # TODO(synk): FourierAttention's class definition was not provided with the
    # module; using FNet-style token mixing (real part of a DFT over hidden
    # then sequence) with masked positions zeroed, written as real matmuls.
    B, S, H = x.shape
    xm = (x * mask[..., None].astype(x.dtype)).astype(jnp.float32)
    ch, sh = _dft_mats(H)
    cs, ss = _dft_mats(S)
    yr = xm @ ch                                  # Re(DFT over hidden)
    yi = -(xm @ sh)                               # Im(DFT over hidden)
    # Re((Cs - i Ss) @ (yr + i yi)) = Cs @ yr + Ss @ yi
    out = (jnp.einsum("ij,bjh->bih", cs, yr)
           + jnp.einsum("ij,bjh->bih", ss, yi))
    return out


# ----------------------------------------------------------------------------
# VMEM budgeting.
# ----------------------------------------------------------------------------
def _vmem_budget_bytes():
    cap = 64 * 1024 * 1024                        # conservative (v7x per-core)
    try:
        info = pltpu.get_tpu_info()
        cap = int(getattr(info, "vmem_capacity_bytes", cap) or cap)
    except Exception:
        pass
    # Leave headroom for Mosaic internal scratch; ~110 MiB on v5e/v6e, ~53 MiB
    # on v7x.
    return max(32 * 1024 * 1024, int(cap * 0.9) - (4 << 20))


def _estimate_vmem_bytes(tm, H, Hff, Vmax, ff_chunk, weight_bufs):
    weights = weight_bufs * 2 * (H * H + 2 * H * Hff)       # bf16 weights
    vectors = 2 * 4 * 8 * Vmax                               # packed f32 vecs
    tiles = 2 * tm * (4 * H + 2 * H + 4 * H)                 # x, attn, out
    live = tm * 4 * (4 * H + 3 * ff_chunk)                   # h1, f, u, g, ...
    return int(1.25 * (weights + vectors + tiles + live))


# ----------------------------------------------------------------------------
# Wrapper.
# ----------------------------------------------------------------------------
def fourier_block_forward(x, mask, params, *, eps=1e-12, tile_rows=512):
    """x: (B, S, H) activations; mask: (B, S) 0/1 validity mask."""
    B, S, H = x.shape
    Hff = params["ff1_w"].shape[1]

    # Attention stand-in (outside the kernel); handed to the kernel in bf16.
    attn = _fourier_attention_standin(x, mask)

    N = B * S
    x2 = x.reshape(N, H).astype(jnp.float32)
    a2 = attn.reshape(N, H).astype(jnp.bfloat16)

    # bf16 MXU weights (f32 accumulation inside the kernel).
    wp = params["proj_w"].astype(jnp.bfloat16)
    w1 = params["ff1_w"].astype(jnp.bfloat16)
    w2 = params["ff2_w"].astype(jnp.bfloat16)

    # Pack the 7 small vectors into one lane-dense (8, Vmax) f32 block.
    Vmax = _round_up(max(H, Hff), 128)
    vec = jnp.zeros((8, Vmax), jnp.float32)
    vec = vec.at[0, :H].set(params["proj_b"].astype(jnp.float32))
    vec = vec.at[1, :H].set(params["gamma1"].astype(jnp.float32))
    vec = vec.at[2, :H].set(params["beta1"].astype(jnp.float32))
    vec = vec.at[3, :H].set(params["ff2_b"].astype(jnp.float32))
    vec = vec.at[4, :H].set(params["gamma2"].astype(jnp.float32))
    vec = vec.at[5, :H].set(params["beta2"].astype(jnp.float32))
    vec = vec.at[6, :Hff].set(params["ff1_b"].astype(jnp.float32))

    # FFN chunk over the Hff axis (multiple of 128 so ref slices stay clean).
    ff_chunk = Hff
    if Hff > 1024:
        for cand in (1024, 512, 256, 128):
            if Hff % cand == 0:
                ff_chunk = cand
                break

    # Row-tile: >= 2 grid steps so the "parallel" axis shards across both
    # v7x TensorCores; shrink if the VMEM estimate exceeds this chip's budget.
    budget = _vmem_budget_bytes()
    tm = max(8, min(tile_rows, _round_up(_cdiv(N, 2), 8)))
    while tm > 64 and _estimate_vmem_bytes(tm, H, Hff, Vmax, ff_chunk, 2) > budget:
        tm = max(64, _round_up(tm // 2, 8))
    grid = _cdiv(N, tm)     # no jnp.pad: Pallas masks the partial last block

    kernel = functools.partial(_fourier_block_kernel, eps=eps, hidden=H,
                               hidden_ff=Hff, ff_chunk=ff_chunk)

    def build(use_buffered):
        def resident(shape):
            if use_buffered:
                return pl.BlockSpec(shape, lambda i: (0, 0),
                                    pipeline_mode=pl.Buffered(1))
            return pl.BlockSpec(shape, lambda i: (0, 0))

        wbuf = 1 if use_buffered else 2
        est = _estimate_vmem_bytes(tm, H, Hff, Vmax, ff_chunk, wbuf)
        vmem_limit = int(min(max(est, 32 * 1024 * 1024), budget))

        return pl.pallas_call(
            kernel,
            out_shape=jax.ShapeDtypeStruct((N, H), x.dtype),
            grid_spec=pltpu.PrefetchScalarGridSpec(
                num_scalar_prefetch=0,
                grid=(grid,),
                in_specs=[
                    pl.BlockSpec((tm, H), lambda i: (i, 0)),   # x rows (f32)
                    pl.BlockSpec((tm, H), lambda i: (i, 0)),   # attn rows (bf16)
                    resident((H, H)),                          # proj W (bf16)
                    resident((H, Hff)),                        # fc1 W  (bf16)
                    resident((Hff, H)),                        # fc2 W  (bf16)
                    resident((8, Vmax)),                       # packed vectors
                ],
                out_specs=pl.BlockSpec((tm, H), lambda i: (i, 0)),
            ),
            compiler_params=pltpu.CompilerParams(
                dimension_semantics=("parallel",),
                vmem_limit_bytes=vmem_limit),
        )

    operands = (x2, a2, wp, w1, w2, vec)
    try:
        out = build(use_buffered=True)(*operands)
    except Exception:
        # pipeline_mode=pl.Buffered(1) not supported on this JAX/Mosaic
        # version -- fall back to default double buffering.
        out = build(use_buffered=False)(*operands)

    return out.reshape(B, S, H)


# ----------------------------------------------------------------------------
# Pure-JAX reference mirroring the PyTorch forward (eval mode, f32, exact erf).
# ----------------------------------------------------------------------------
def _layer_norm_ref(v, gamma, beta, eps):
    u = v.mean(-1, keepdims=True)
    s = ((v - u) ** 2).mean(-1, keepdims=True)
    return gamma * ((v - u) / jnp.sqrt(s + eps)) + beta


def _reference(x, mask, params, eps=1e-12):
    h = _fourier_attention_standin(x, mask)
    h = h @ params["proj_w"] + params["proj_b"]
    h1 = _layer_norm_ref(x + h, params["gamma1"], params["beta1"], eps)
    u = h1 @ params["ff1_w"] + params["ff1_b"]
    g = u * 0.5 * (1.0 + jax.lax.erf(u / jnp.sqrt(2.0)))
    f = g @ params["ff2_w"] + params["ff2_b"]
    return _layer_norm_ref(h1 + f, params["gamma2"], params["beta2"], eps)


if __name__ == "__main__":
    # Small transformer-block config (lane-dense hidden dims).
    B, S, H, Hff = 2, 16, 128, 512

    key = jax.random.PRNGKey(0)
    ks = jax.random.split(key, 8)

    def lin_init(kw, kb, fan_in, shape_w, shape_b):
        bound = 1.0 / math.sqrt(fan_in)
        w = jax.random.uniform(kw, shape_w, jnp.float32, -bound, bound)
        b = jax.random.uniform(kb, shape_b, jnp.float32, -bound, bound)
        return w, b

    proj_w, proj_b = lin_init(ks[0], ks[1], H, (H, H), (H,))
    ff1_w, ff1_b = lin_init(ks[2], ks[3], H, (H, Hff), (Hff,))
    ff2_w, ff2_b = lin_init(ks[4], ks[5], Hff, (Hff, H), (H,))

    params = {
        "proj_w": proj_w, "proj_b": proj_b,
        "ff1_w": ff1_w, "ff1_b": ff1_b,
        "ff2_w": ff2_w, "ff2_b": ff2_b,
        "gamma1": jnp.ones((H,), jnp.float32),
        "beta1": jnp.zeros((H,), jnp.float32),
        "gamma2": jnp.ones((H,), jnp.float32),
        "beta2": jnp.zeros((H,), jnp.float32),
    }

    x = jax.random.normal(ks[6], (B, S, H), dtype=jnp.float32)
    mask = jnp.ones((B, S), dtype=jnp.int32).at[1, S - 3:].set(0)

    out = fourier_block_forward(x, mask, params)
    out = jax.block_until_ready(out)

    ref = _reference(x, mask, params)
    assert out.shape == (B, S, H)
    # Kernel uses bf16 MXU operands (f32 accumulation) and tanh-GELU, so
    # compare against the f32 exact-erf reference with a bf16-appropriate
    # tolerance.
    assert jnp.allclose(out, ref, atol=3e-2, rtol=3e-2), "mismatch vs reference"

    print("KERNEL_OK")
</pallas_src>

<mosaic_0001>
module attributes {stable_mosaic.version = 11 : i64} {
  func.func @_fourier_block_kernel(%arg0: i32, %arg1: memref<16x128xf32, #tpu.memory_space<vmem>>, %arg2: memref<16x128xbf16, #tpu.memory_space<vmem>>, %arg3: memref<128x128xbf16, #tpu.memory_space<vmem>>, %arg4: memref<128x512xbf16, #tpu.memory_space<vmem>>, %arg5: memref<512x128xbf16, #tpu.memory_space<vmem>>, %arg6: memref<8x512xf32, #tpu.memory_space<vmem>>, %arg7: memref<16x128xf32, #tpu.memory_space<vmem>>) attributes {dimension_semantics = [#tpu.dimension_semantics<parallel>], iteration_bounds = array<i64: 2>, scalar_prefetch = 0 : i64, scratch_operands = 0 : i64, tpu.core_type = #tpu.core_type<tc>, window_params = [{transform_indices = @transform_0, window_bounds = array<i64: 16, 128>}, {transform_indices = @transform_1, window_bounds = array<i64: 16, 128>}, {pipeline_mode = #tpu.pipeline_mode<synchronous>, transform_indices = @transform_2, window_bounds = array<i64: 128, 128>}, {pipeline_mode = #tpu.pipeline_mode<synchronous>, transform_indices = @transform_3, window_bounds = array<i64: 128, 512>}, {pipeline_mode = #tpu.pipeline_mode<synchronous>, transform_indices = @transform_4, window_bounds = array<i64: 512, 128>}, {pipeline_mode = #tpu.pipeline_mode<synchronous>, transform_indices = @transform_5, window_bounds = array<i64: 8, 512>}, {transform_indices = @transform_6, window_bounds = array<i64: 16, 128>}]} {
    %c0 = arith.constant 0 : index
    %c0_0 = arith.constant 0 : index
    %0 = vector.load %arg6[%c0, %c0_0] : memref<8x512xf32, #tpu.memory_space<vmem>>, vector<8x512xf32>
    %1 = vector.extract_strided_slice %0 {offsets = [0, 0], sizes = [1, 128], strides = [1, 1]} : vector<8x512xf32> to vector<1x128xf32>
    %2 = vector.extract_strided_slice %0 {offsets = [1, 0], sizes = [1, 128], strides = [1, 1]} : vector<8x512xf32> to vector<1x128xf32>
    %3 = vector.extract_strided_slice %0 {offsets = [2, 0], sizes = [1, 128], strides = [1, 1]} : vector<8x512xf32> to vector<1x128xf32>
    %4 = vector.extract_strided_slice %0 {offsets = [3, 0], sizes = [1, 128], strides = [1, 1]} : vector<8x512xf32> to vector<1x128xf32>
    %5 = vector.extract_strided_slice %0 {offsets = [4, 0], sizes = [1, 128], strides = [1, 1]} : vector<8x512xf32> to vector<1x128xf32>
    %6 = vector.extract_strided_slice %0 {offsets = [5, 0], sizes = [1, 128], strides = [1, 1]} : vector<8x512xf32> to vector<1x128xf32>
    %c0_1 = arith.constant 0 : index
    %c0_2 = arith.constant 0 : index
    %7 = vector.load %arg1[%c0_1, %c0_2] : memref<16x128xf32, #tpu.memory_space<vmem>>, vector<16x128xf32>
    %c0_3 = arith.constant 0 : index
    %c0_4 = arith.constant 0 : index
    %8 = vector.load %arg2[%c0_3, %c0_4] : memref<16x128xbf16, #tpu.memory_space<vmem>>, vector<16x128xbf16>
    %c0_5 = arith.constant 0 : index
    %c0_6 = arith.constant 0 : index
    %9 = vector.load %arg3[%c0_5, %c0_6] : memref<128x128xbf16, #tpu.memory_space<vmem>>, vector<128x128xbf16>
    %cst = arith.constant dense<0.000000e+00> : vector<16x128xf32>
    %10 = tpu.matmul %8, %9, %cst {dimension_numbers = #tpu.dot_dimension_numbers<[1], [0], [0], [1], [0, 0, 1, 1], [], []>} : vector<16x128xbf16>, vector<128x128xbf16>, vector<16x128xf32> -> vector<16x128xf32>
    %11 = arith.addf %7, %10 : vector<16x128xf32>
    %12 = vector.broadcast %1 : vector<1x128xf32> to vector<16x128xf32>
    %13 = arith.addf %11, %12 : vector<16x128xf32>
    %cst_7 = arith.constant dense<0.000000e+00> : vector<16xf32>
    %14 = vector.multi_reduction <add>, %13, %cst_7 [1] : vector<16x128xf32> to vector<16xf32>
    %15 = vector.shape_cast %14 : vector<16xf32> to vector<16x1xf32>
    %cst_8 = arith.constant 1.280000e+02 : f32
    %16 = vector.broadcast %cst_8 : f32 to vector<16x1xf32>
    %17 = arith.divf %15, %16 : vector<16x1xf32>
    %18 = vector.broadcast %17 : vector<16x1xf32> to vector<16x128xf32>
    %19 = arith.subf %13, %18 : vector<16x128xf32>
    %20 = arith.mulf %19, %19 : vector<16x128xf32>
    %cst_9 = arith.constant dense<0.000000e+00> : vector<16xf32>
    %21 = vector.multi_reduction <add>, %20, %cst_9 [1] : vector<16x128xf32> to vector<16xf32>
    %22 = vector.shape_cast %21 : vector<16xf32> to vector<16x1xf32>
    %cst_10 = arith.constant 1.280000e+02 : f32
    %23 = vector.broadcast %cst_10 : f32 to vector<16x1xf32>
    %24 = arith.divf %22, %23 : vector<16x1xf32>
    %cst_11 = arith.constant 9.99999996E-13 : f32
    %25 = vector.broadcast %cst_11 : f32 to vector<16x1xf32>
    %26 = arith.addf %24, %25 : vector<16x1xf32>
    %27 = math.rsqrt %26 : vector<16x1xf32>
    %28 = vector.broadcast %27 : vector<16x1xf32> to vector<16x128xf32>
    %29 = arith.mulf %19, %28 : vector<16x128xf32>
    %30 = vector.broadcast %2 : vector<1x128xf32> to vector<16x128xf32>
    %31 = arith.mulf %30, %29 : vector<16x128xf32>
    %32 = vector.broadcast %3 : vector<1x128xf32> to vector<16x128xf32>
    %33 = arith.addf %31, %32 : vector<16x128xf32>
    %34 = arith.truncf %33 : vector<16x128xf32> to vector<16x128xbf16>
    %cst_12 = arith.constant 0.000000e+00 : f32
    %35 = vector.broadcast %cst_12 : f32 to vector<16x128xf32>
    %c0_13 = arith.constant 0 : index
    %c0_14 = arith.constant 0 : index
    %36 = vector.load %arg4[%c0_13, %c0_14] : memref<128x512xbf16, #tpu.memory_space<vmem>>, vector<128x512xbf16>
    %cst_15 = arith.constant dense<0.000000e+00> : vector<16x512xf32>
    %37 = tpu.matmul %34, %36, %cst_15 {dimension_numbers = #tpu.dot_dimension_numbers<[1], [0], [0], [1], [0, 0, 1, 1], [], []>} : vector<16x128xbf16>, vector<128x512xbf16>, vector<16x512xf32> -> vector<16x512xf32>
    %38 = vector.extract_strided_slice %0 {offsets = [6, 0], sizes = [1, 512], strides = [1, 1]} : vector<8x512xf32> to vector<1x512xf32>
    %39 = vector.broadcast %38 : vector<1x512xf32> to vector<16x512xf32>
    %40 = arith.addf %37, %39 : vector<16x512xf32>
    %cst_16 = arith.constant 5.000000e-01 : f32
    %41 = vector.broadcast %cst_16 : f32 to vector<16x512xf32>
    %42 = arith.mulf %41, %40 : vector<16x512xf32>
    %cst_17 = arith.constant 4.471500e-02 : f32
    %43 = vector.broadcast %cst_17 : f32 to vector<16x512xf32>
    %44 = arith.mulf %43, %40 : vector<16x512xf32>
    %45 = arith.mulf %44, %40 : vector<16x512xf32>
    %46 = arith.mulf %45, %40 : vector<16x512xf32>
    %47 = arith.addf %40, %46 : vector<16x512xf32>
    %cst_18 = arith.constant 0.797884583 : f32
    %48 = vector.broadcast %cst_18 : f32 to vector<16x512xf32>
    %49 = arith.mulf %48, %47 : vector<16x512xf32>
    %50 = math.tanh %49 : vector<16x512xf32>
    %cst_19 = arith.constant 1.000000e+00 : f32
    %51 = vector.broadcast %cst_19 : f32 to vector<16x512xf32>
    %52 = arith.addf %51, %50 : vector<16x512xf32>
    %53 = arith.mulf %42, %52 : vector<16x512xf32>
    %54 = arith.truncf %53 : vector<16x512xf32> to vector<16x512xbf16>
    %c0_20 = arith.constant 0 : index
    %c0_21 = arith.constant 0 : index
    %55 = vector.load %arg5[%c0_20, %c0_21] : memref<512x128xbf16, #tpu.memory_space<vmem>>, vector<512x128xbf16>
    %cst_22 = arith.constant dense<0.000000e+00> : vector<16x128xf32>
    %56 = tpu.matmul %54, %55, %cst_22 {dimension_numbers = #tpu.dot_dimension_numbers<[1], [0], [0], [1], [0, 0, 1, 1], [], []>} : vector<16x512xbf16>, vector<512x128xbf16>, vector<16x128xf32> -> vector<16x128xf32>
    %57 = arith.addf %35, %56 : vector<16x128xf32>
    %58 = vector.broadcast %4 : vector<1x128xf32> to vector<16x128xf32>
    %59 = arith.addf %57, %58 : vector<16x128xf32>
    %60 = arith.addf %33, %59 : vector<16x128xf32>
    %cst_23 = arith.constant dense<0.000000e+00> : vector<16xf32>
    %61 = vector.multi_reduction <add>, %60, %cst_23 [1] : vector<16x128xf32> to vector<16xf32>
    %62 = vector.shape_cast %61 : vector<16xf32> to vector<16x1xf32>
    %cst_24 = arith.constant 1.280000e+02 : f32
    %63 = vector.broadcast %cst_24 : f32 to vector<16x1xf32>
    %64 = arith.divf %62, %63 : vector<16x1xf32>
    %65 = vector.broadcast %64 : vector<16x1xf32> to vector<16x128xf32>
    %66 = arith.subf %60, %65 : vector<16x128xf32>
    %67 = arith.mulf %66, %66 : vector<16x128xf32>
    %cst_25 = arith.constant dense<0.000000e+00> : vector<16xf32>
    %68 = vector.multi_reduction <add>, %67, %cst_25 [1] : vector<16x128xf32> to vector<16xf32>
    %69 = vector.shape_cast %68 : vector<16xf32> to vector<16x1xf32>
    %cst_26 = arith.constant 1.280000e+02 : f32
    %70 = vector.broadcast %cst_26 : f32 to vector<16x1xf32>
    %71 = arith.divf %69, %70 : vector<16x1xf32>
    %cst_27 = arith.constant 9.99999996E-13 : f32
    %72 = vector.broadcast %cst_27 : f32 to vector<16x1xf32>
    %73 = arith.addf %71, %72 : vector<16x1xf32>
    %74 = math.rsqrt %73 : vector<16x1xf32>
    %75 = vector.broadcast %74 : vector<16x1xf32> to vector<16x128xf32>
    %76 = arith.mulf %66, %75 : vector<16x128xf32>
    %77 = vector.broadcast %5 : vector<1x128xf32> to vector<16x128xf32>
    %78 = arith.mulf %77, %76 : vector<16x128xf32>
    %79 = vector.broadcast %6 : vector<1x128xf32> to vector<16x128xf32>
    %80 = arith.addf %78, %79 : vector<16x128xf32>
    %c0_28 = arith.constant 0 : index
    %c0_29 = arith.constant 0 : index
    %81 = vector.load %arg7[%c0_28, %c0_29] : memref<16x128xf32, #tpu.memory_space<vmem>>, vector<16x128xf32>
    tpu.vector_store %arg7[%c0_28, %c0_29], %80 {strides = array<i32>} : memref<16x128xf32, #tpu.memory_space<vmem>>, vector<16x128xf32>,
    return
  }
  func.func @transform_0(%arg0: i32) -> (i32, i32) {
    %c0_i32 = arith.constant 0 : i32
    %c0_i32_0 = arith.constant 0 : i32
    return %arg0, %c0_i32 : i32, i32
  }
  func.func @transform_1(%arg0: i32) -> (i32, i32) {
    %c0_i32 = arith.constant 0 : i32
    %c0_i32_0 = arith.constant 0 : i32
    return %arg0, %c0_i32 : i32, i32
  }
  func.func @transform_2(%arg0: i32) -> (i32, i32) {
    %c0_i32 = arith.constant 0 : i32
    %c0_i32_0 = arith.constant 0 : i32
    %c0_i32_1 = arith.constant 0 : i32
    return %c0_i32, %c0_i32_0 : i32, i32
  }
  func.func @transform_3(%arg0: i32) -> (i32, i32) {
    %c0_i32 = arith.constant 0 : i32
    %c0_i32_0 = arith.constant 0 : i32
    %c0_i32_1 = arith.constant 0 : i32
    return %c0_i32, %c0_i32_0 : i32, i32
  }
  func.func @transform_4(%arg0: i32) -> (i32, i32) {
    %c0_i32 = arith.constant 0 : i32
    %c0_i32_0 = arith.constant 0 : i32
    %c0_i32_1 = arith.constant 0 : i32
    return %c0_i32, %c0_i32_0 : i32, i32
  }
  func.func @transform_5(%arg0: i32) -> (i32, i32) {
    %c0_i32 = arith.constant 0 : i32
    %c0_i32_0 = arith.constant 0 : i32
    %c0_i32_1 = arith.constant 0 : i32
    return %c0_i32, %c0_i32_0 : i32, i32
  }
  func.func @transform_6(%arg0: i32) -> (i32, i32) {
    %c0_i32 = arith.constant 0 : i32
    %c0_i32_0 = arith.constant 0 : i32
    return %arg0, %c0_i32 : i32, i32
  }
}

module attributes {stable_mosaic.version = 11 : i64} {
  func.func @_fourier_block_kernel(%arg0: i32, %arg1: memref<16x128xf32, #tpu.memory_space<vmem>>, %arg2: memref<16x128xbf16, #tpu.memory_space<vmem>>, %arg3: memref<128x128xbf16, #tpu.memory_space<vmem>>, %arg4: memref<128x512xbf16, #tpu.memory_space<vmem>>, %arg5: memref<512x128xbf16, #tpu.memory_space<vmem>>, %arg6: memref<8x512xf32, #tpu.memory_space<vmem>>, %arg7: memref<16x128xf32, #tpu.memory_space<vmem>>) attributes {dimension_semantics = [#tpu.dimension_semantics<parallel>], iteration_bounds = array<i64: 2>, scalar_prefetch = 0 : i64, scratch_operands = 0 : i64, tpu.core_type = #tpu.core_type<tc>, window_params = [{transform_indices = @transform_0, window_bounds = array<i64: 16, 128>}, {transform_indices = @transform_1, window_bounds = array<i64: 16, 128>}, {pipeline_mode = #tpu.pipeline_mode<synchronous>, transform_indices = @transform_2, window_bounds = array<i64: 128, 128>}, {pipeline_mode = #tpu.pipeline_mode<synchronous>, transform_indices = @transform_3, window_bounds = array<i64: 128, 512>}, {pipeline_mode = #tpu.pipeline_mode<synchronous>, transform_indices = @transform_4, window_bounds = array<i64: 512, 128>}, {pipeline_mode = #tpu.pipeline_mode<synchronous>, transform_indices = @transform_5, window_bounds = array<i64: 8, 512>}, {transform_indices = @transform_6, window_bounds = array<i64: 16, 128>}]} {
    %c0 = arith.constant 0 : index
    %c0_0 = arith.constant 0 : index
    %0 = vector.load %arg6[%c0, %c0_0] : memref<8x512xf32, #tpu.memory_space<vmem>>, vector<8x512xf32>
    %1 = vector.extract_strided_slice %0 {offsets = [0, 0], sizes = [1, 128], strides = [1, 1]} : vector<8x512xf32> to vector<1x128xf32>
    %2 = vector.extract_strided_slice %0 {offsets = [1, 0], sizes = [1, 128], strides = [1, 1]} : vector<8x512xf32> to vector<1x128xf32>
    %3 = vector.extract_strided_slice %0 {offsets = [2, 0], sizes = [1, 128], strides = [1, 1]} : vector<8x512xf32> to vector<1x128xf32>
    %4 = vector.extract_strided_slice %0 {offsets = [3, 0], sizes = [1, 128], strides = [1, 1]} : vector<8x512xf32> to vector<1x128xf32>
    %5 = vector.extract_strided_slice %0 {offsets = [4, 0], sizes = [1, 128], strides = [1, 1]} : vector<8x512xf32> to vector<1x128xf32>
    %6 = vector.extract_strided_slice %0 {offsets = [5, 0], sizes = [1, 128], strides = [1, 1]} : vector<8x512xf32> to vector<1x128xf32>
    %c0_1 = arith.constant 0 : index
    %c0_2 = arith.constant 0 : index
    %7 = vector.load %arg1[%c0_1, %c0_2] : memref<16x128xf32, #tpu.memory_space<vmem>>, vector<16x128xf32>
    %c0_3 = arith.constant 0 : index
    %c0_4 = arith.constant 0 : index
    %8 = vector.load %arg2[%c0_3, %c0_4] : memref<16x128xbf16, #tpu.memory_space<vmem>>, vector<16x128xbf16>
    %c0_5 = arith.constant 0 : index
    %c0_6 = arith.constant 0 : index
    %9 = vector.load %arg3[%c0_5, %c0_6] : memref<128x128xbf16, #tpu.memory_space<vmem>>, vector<128x128xbf16>
    %cst = arith.constant dense<0.000000e+00> : vector<16x128xf32>
    %10 = tpu.matmul %8, %9, %cst {dimension_numbers = #tpu.dot_dimension_numbers<[1], [0], [0], [1], [0, 0, 1, 1], [], []>} : vector<16x128xbf16>, vector<128x128xbf16>, vector<16x128xf32> -> vector<16x128xf32>
    %11 = arith.addf %7, %10 : vector<16x128xf32>
    %12 = vector.broadcast %1 : vector<1x128xf32> to vector<16x128xf32>
    %13 = arith.addf %11, %12 : vector<16x128xf32>
    %cst_7 = arith.constant dense<0.000000e+00> : vector<16xf32>
    %14 = vector.multi_reduction <add>, %13, %cst_7 [1] : vector<16x128xf32> to vector<16xf32>
    %15 = vector.shape_cast %14 : vector<16xf32> to vector<16x1xf32>
    %cst_8 = arith.constant 1.280000e+02 : f32
    %16 = vector.broadcast %cst_8 : f32 to vector<16x1xf32>
    %17 = arith.divf %15, %16 : vector<16x1xf32>
    %18 = vector.broadcast %17 : vector<16x1xf32> to vector<16x128xf32>
    %19 = arith.subf %13, %18 : vector<16x128xf32>
    %20 = arith.mulf %19, %19 : vector<16x128xf32>
    %cst_9 = arith.constant dense<0.000000e+00> : vector<16xf32>
    %21 = vector.multi_reduction <add>, %20, %cst_9 [1] : vector<16x128xf32> to vector<16xf32>
    %22 = vector.shape_cast %21 : vector<16xf32> to vector<16x1xf32>
    %cst_10 = arith.constant 1.280000e+02 : f32
    %23 = vector.broadcast %cst_10 : f32 to vector<16x1xf32>
    %24 = arith.divf %22, %23 : vector<16x1xf32>
    %cst_11 = arith.constant 9.99999996E-13 : f32
    %25 = vector.broadcast %cst_11 : f32 to vector<16x1xf32>
    %26 = arith.addf %24, %25 : vector<16x1xf32>
    %27 = math.rsqrt %26 : vector<16x1xf32>
    %28 = vector.broadcast %27 : vector<16x1xf32> to vector<16x128xf32>
    %29 = arith.mulf %19, %28 : vector<16x128xf32>
    %30 = vector.broadcast %2 : vector<1x128xf32> to vector<16x128xf32>
    %31 = arith.mulf %30, %29 : vector<16x128xf32>
    %32 = vector.broadcast %3 : vector<1x128xf32> to vector<16x128xf32>
    %33 = arith.addf %31, %32 : vector<16x128xf32>
    %34 = arith.truncf %33 : vector<16x128xf32> to vector<16x128xbf16>
    %cst_12 = arith.constant 0.000000e+00 : f32
    %35 = vector.broadcast %cst_12 : f32 to vector<16x128xf32>
    %c0_13 = arith.constant 0 : index
    %c0_14 = arith.constant 0 : index
    %36 = vector.load %arg4[%c0_13, %c0_14] : memref<128x512xbf16, #tpu.memory_space<vmem>>, vector<128x512xbf16>
    %cst_15 = arith.constant dense<0.000000e+00> : vector<16x512xf32>
    %37 = tpu.matmul %34, %36, %cst_15 {dimension_numbers = #tpu.dot_dimension_numbers<[1], [0], [0], [1], [0, 0, 1, 1], [], []>} : vector<16x128xbf16>, vector<128x512xbf16>, vector<16x512xf32> -> vector<16x512xf32>
    %38 = vector.extract_strided_slice %0 {offsets = [6, 0], sizes = [1, 512], strides = [1, 1]} : vector<8x512xf32> to vector<1x512xf32>
    %39 = vector.broadcast %38 : vector<1x512xf32> to vector<16x512xf32>
    %40 = arith.addf %37, %39 : vector<16x512xf32>
    %cst_16 = arith.constant 5.000000e-01 : f32
    %41 = vector.broadcast %cst_16 : f32 to vector<16x512xf32>
    %42 = arith.mulf %41, %40 : vector<16x512xf32>
    %cst_17 = arith.constant 4.471500e-02 : f32
    %43 = vector.broadcast %cst_17 : f32 to vector<16x512xf32>
    %44 = arith.mulf %43, %40 : vector<16x512xf32>
    %45 = arith.mulf %44, %40 : vector<16x512xf32>
    %46 = arith.mulf %45, %40 : vector<16x512xf32>
    %47 = arith.addf %40, %46 : vector<16x512xf32>
    %cst_18 = arith.constant 0.797884583 : f32
    %48 = vector.broadcast %cst_18 : f32 to vector<16x512xf32>
    %49 = arith.mulf %48, %47 : vector<16x512xf32>
    %50 = math.tanh %49 : vector<16x512xf32>
    %cst_19 = arith.constant 1.000000e+00 : f32
    %51 = vector.broadcast %cst_19 : f32 to vector<16x512xf32>
    %52 = arith.addf %51, %50 : vector<16x512xf32>
    %53 = arith.mulf %42, %52 : vector<16x512xf32>
    %54 = arith.truncf %53 : vector<16x512xf32> to vector<16x512xbf16>
    %c0_20 = arith.constant 0 : index
    %c0_21 = arith.constant 0 : index
    %55 = vector.load %arg5[%c0_20, %c0_21] : memref<512x128xbf16, #tpu.memory_space<vmem>>, vector<512x128xbf16>
    %cst_22 = arith.constant dense<0.000000e+00> : vector<16x128xf32>
    %56 = tpu.matmul %54, %55, %cst_22 {dimension_numbers = #tpu.dot_dimension_numbers<[1], [0], [0], [1], [0, 0, 1, 1], [], []>} : vector<16x512xbf16>, vector<512x128xbf16>, vector<16x128xf32> -> vector<16x128xf32>
    %57 = arith.addf %35, %56 : vector<16x128xf32>
    %58 = vector.broadcast %4 : vector<1x128xf32> to vector<16x128xf32>
    %59 = arith.addf %57, %58 : vector<16x128xf32>
    %60 = arith.addf %33, %59 : vector<16x128xf32>
    %cst_23 = arith.constant dense<0.000000e+00> : vector<16xf32>
    %61 = vector.multi_reduction <add>, %60, %cst_23 [1] : vector<16x128xf32> to vector<16xf32>
    %62 = vector.shape_cast %61 : vector<16xf32> to vector<16x1xf32>
    %cst_24 = arith.constant 1.280000e+02 : f32
    %63 = vector.broadcast %cst_24 : f32 to vector<16x1xf32>
    %64 = arith.divf %62, %63 : vector<16x1xf32>
    %65 = vector.broadcast %64 : vector<16x1xf32> to vector<16x128xf32>
    %66 = arith.subf %60, %65 : vector<16x128xf32>
    %67 = arith.mulf %66, %66 : vector<16x128xf32>
    %cst_25 = arith.constant dense<0.000000e+00> : vector<16xf32>
    %68 = vector.multi_reduction <add>, %67, %cst_25 [1] : vector<16x128xf32> to vector<16xf32>
    %69 = vector.shape_cast %68 : vector<16xf32> to vector<16x1xf32>
    %cst_26 = arith.constant 1.280000e+02 : f32
    %70 = vector.broadcast %cst_26 : f32 to vector<16x1xf32>
    %71 = arith.divf %69, %70 : vector<16x1xf32>
    %cst_27 = arith.constant 9.99999996E-13 : f32
    %72 = vector.broadcast %cst_27 : f32 to vector<16x1xf32>
    %73 = arith.addf %71, %72 : vector<16x1xf32>
    %74 = math.rsqrt %73 : vector<16x1xf32>
    %75 = vector.broadcast %74 : vector<16x1xf32> to vector<16x128xf32>
    %76 = arith.mulf %66, %75 : vector<16x128xf32>
    %77 = vector.broadcast %5 : vector<1x128xf32> to vector<16x128xf32>
    %78 = arith.mulf %77, %76 : vector<16x128xf32>
    %79 = vector.broadcast %6 : vector<1x128xf32> to vector<16x128xf32>
    %80 = arith.addf %78, %79 : vector<16x128xf32>
    %c0_28 = arith.constant 0 : index
    %c0_29 = arith.constant 0 : index
    %81 = vector.load %arg7[%c0_28, %c0_29] : memref<16x128xf32, #tpu.memory_space<vmem>>, vector<16x128xf32>
    tpu.vector_store %arg7[%c0_28, %c0_29], %80 {strides = array<i32>} : memref<16x128xf32, #tpu.memory_space<vmem>>, vector<16x128xf32>,
    return
  }
  func.func @transform_0(%arg0: i32) -> (i32, i32) {
    %c0_i32 = arith.constant 0 : i32
    %c0_i32_0 = arith.constant 0 : i32
    return %arg0, %c0_i32 : i32, i32
  }
  func.func @transform_1(%arg0: i32) -> (i32, i32) {
    %c0_i32 = arith.constant 0 : i32
    %c0_i32_0 = arith.constant 0 : i32
    return %arg0, %c0_i32 : i32, i32
  }
  func.func @transform_2(%arg0: i32) -> (i32, i32) {
    %c0_i32 = arith.constant 0 : i32
    %c0_i32_0 = arith.constant 0 : i32
    %c0_i32_1 = arith.constant 0 : i32
    return %c0_i32, %c0_i32_0 : i32, i32
  }
  func.func @transform_3(%arg0: i32) -> (i32, i32) {
    %c0_i32 = arith.constant 0 : i32
    %c0_i32_0 = arith.constant 0 : i32
    %c0_i32_1 = arith.constant 0 : i32
    return %c0_i32, %c0_i32_0 : i32, i32
  }
  func.func @transform_4(%arg0: i32) -> (i32, i32) {
    %c0_i32 = arith.constant 0 : i32
    %c0_i32_0 = arith.constant 0 : i32
    %c0_i32_1 = arith.constant 0 : i32
    return %c0_i32, %c0_i32_0 : i32, i32
  }
  func.func @transform_5(%arg0: i32) -> (i32, i32) {
    %c0_i32 = arith.constant 0 : i32
    %c0_i32_0 = arith.constant 0 : i32
    %c0_i32_1 = arith.constant 0 : i32
    return %c0_i32, %c0_i32_0 : i32, i32
  }
  func.func @transform_6(%arg0: i32) -> (i32, i32) {
    %c0_i32 = arith.constant 0 : i32
    %c0_i32_0 = arith.constant 0 : i32
    return %arg0, %c0_i32 : i32, i32
  }
}

</mosaic_0001>

<llo_original>
// kernel: tpu_custom_call.1
$region0: #{tpu_custom_call.1}
  #allocation0 [shape = 'u32[]', space=smem, size = 0x4, offset = 0x4, fixed_abs, tag = 'smem constant byte address 0x4 - core index']
  #allocation1 [shape = 'u32[144,128]{1,0:T(1,128)}', space=vmem, size = 0x12000, scoped, tag = 'internal scratch']
  %s0 = inlined_call_operand.hbm [shape: f32[32,128], index: 0, kind: input, shape index: {}]
  %s1 = inlined_call_operand.hbm [shape: bf16[32,128], index: 1, kind: input, shape index: {}]
  %s2 = inlined_call_operand.hbm [shape: bf16[128,128], index: 2, kind: input, shape index: {}]
  %s3 = inlined_call_operand.hbm [shape: bf16[128,512], index: 3, kind: input, shape index: {}]
  %s4 = inlined_call_operand.hbm [shape: bf16[512,128], index: 4, kind: input, shape index: {}]
  %s5 = inlined_call_operand.hbm [shape: f32[8,512], index: 5, kind: input, shape index: {}]
  %s6 = inlined_call_operand.hbm [shape: f32[32,128], index: 6, kind: output, shape index: {}]
  %s7 = sld [smem:[#allocation0]]
  $region81: #{tpu_custom_call.1} parent=0
    _
  %s9 = ssub.s32 1, %s7
  %s10 = scalar_select 0, %s9, %s7
  $region1: #{tpu_custom_call.1} parent=0
    #allocation2 [shape = 'u8[16384]{0}', space=vmem, size = 0x4000, scoped, tag = 'input window, operand 0']
    #allocation3 [shape = 's32[2]{0}', space=sflag, size = 0x8, scoped, tag = 'scoped memory for tpu_custom_call.1']
    #allocation4 [shape = 's32[2]{0}', space=sflag, size = 0x8, scoped, tag = 'scoped memory for tpu_custom_call.1']
    #allocation5 [shape = 'u8[8192]{0}', space=vmem, size = 0x2000, scoped, tag = 'input window, operand 1']
    #allocation6 [shape = 's32[2]{0}', space=sflag, size = 0x8, scoped, tag = 'scoped memory for tpu_custom_call.1']
    #allocation7 [shape = 'u8[32768]{0}', space=vmem, size = 0x8000, scoped, tag = 'input window, operand 2, single buffered']
    #allocation8 [shape = 'u8[131072]{0}', space=vmem, size = 0x20000, scoped, tag = 'input window, operand 3, single buffered']
    #allocation9 [shape = 's32[1]{0}', space=sflag, size = 0x4, scoped, tag = 'scoped memory for tpu_custom_call.1']
    #allocation10 [shape = 'u8[131072]{0}', space=vmem, size = 0x20000, scoped, tag = 'input window, operand 4, single buffered']
    #allocation11 [shape = 'u8[16384]{0}', space=vmem, size = 0x4000, scoped, tag = 'input window, operand 5, single buffered']
    #allocation12 [shape = 's32[1]{0}', space=sflag, size = 0x4, scoped, tag = 'scoped memory for tpu_custom_call.1']
    #allocation13 [shape = 'u8[16384]{0}', space=vmem, size = 0x4000, scoped, tag = 'output window, operand 0']
    %11 = vsyncpa [#allocation3], 0
    %s12 = scalar_lea.sflag [#allocation3], 1
    %13 = vsyncpa %s12, 0
    %14 = vsyncpa [#allocation6], 0
    %s15 = scalar_lea.sflag [#allocation6], 1
    %16 = vsyncpa %s15, 0
    %17 = vsyncpa [#allocation9], 0
    %18 = vsyncpa [#allocation12], 0
    %19 = vsyncpa [#allocation4], 0
    %s20 = scalar_lea.sflag [#allocation4], 1
    %21 = vsyncpa %s20, 0
    loop: start=0, step=1, limit=4
    $region2: #{tpu_custom_call.1} parent=1 // loop_pre_header
      _
    $region3: #{tpu_custom_call.1} parent=1 // loop_header
      %s23 = sphi 0, %s27
      %p24 = scmp.ge.s32.totalorder %s23, 4
      %s33 = sphi 0, %s35
      %s36 = sphi 0, %s33
      %s37 = sphi 0, %s36
      %s53 = sphi 0, %s37
      %s59 = sphi 0, %s61
      %s62 = sphi 0, %s59
      %s63 = sphi 0, %s62
      %s79 = sphi 0, %s63
      %s83 = sphi 0, %s83
      %s85 = sphi 0, %s83
      %s86 = sphi 0, %s85
      %s100 = sphi 0, %s86
      %s104 = sphi 0, %s104
      %s106 = sphi 0, %s104
      %s107 = sphi 0, %s106
      %s121 = sphi 0, %s107
      %s125 = sphi 0, %s125
      %s127 = sphi 0, %s125
      %s128 = sphi 0, %s127
      %s142 = sphi 0, %s128
      %s146 = sphi 0, %s146
      %s148 = sphi 0, %s146
      %s149 = sphi 0, %s148
      %s163 = sphi 0, %s149
      %s169 = sphi 0, %s171
      %s172 = sphi 0, %s169
      %s173 = sphi 0, %s172
      %s189 = sphi 0, %s173
    $region4: #{tpu_custom_call.1} parent=1 // loop_header_branch
      %26 = sbr.rel (%p24) target = $region8
    $region5: #{tpu_custom_call.1} parent=1 // loop_body
      %s28 = ssub.s32 %s23, 1
      %s29 = ssub.s32 %s23, 2
      %s30 = sadd.s32 %s23, 1
      %s31 = ssub.s32 %s23, %s30
      %p32 = scmp.eq.s32.totalorder %s31, 0
      %s34 = sadd.s32 %s33, 1
      %s35 = scalar_select %p32, %s33, %s34
      %p38 = pneg %p32
      %p39 = scmp.eq.s32.totalorder %s23, 1
      %p40 = por %p38, %p39
      %p41 = scmp.ne.s32.totalorder %s33, %s36
      %p42 = scmp.eq.s32.totalorder %s23, 0
      %p43 = por %p41, %p42
      %p44 = scmp.ne.s32.totalorder %s33, %s36
      %p45 = scmp.eq.s32.totalorder %s28, 1
      %p46 = por %p44, %p45
      %p47 = scmp.ne.s32.totalorder %s36, %s37
      %p48 = scmp.eq.s32.totalorder %s28, 0
      %p49 = por %p47, %p48
      %p50 = scmp.ne.s32.totalorder %s36, %s37
      %p51 = scmp.eq.s32.totalorder %s29, 1
      %p52 = por %p50, %p51
      %p54 = scmp.ne.s32.totalorder %s37, %s53
      %p55 = scmp.eq.s32.totalorder %s29, 0
      %p56 = por %p54, %p55
      %s57 = ssub.s32 %s23, %s30
      %p58 = scmp.eq.s32.totalorder %s57, 0
      %s60 = sadd.s32 %s59, 1
      %s61 = scalar_select %p58, %s59, %s60
      %p64 = pneg %p58
      %p65 = scmp.eq.s32.totalorder %s23, 1
      %p66 = por %p64, %p65
      %p67 = scmp.ne.s32.totalorder %s59, %s62
      %p68 = scmp.eq.s32.totalorder %s23, 0
      %p69 = por %p67, %p68
      %p70 = scmp.ne.s32.totalorder %s59, %s62
      %p71 = scmp.eq.s32.totalorder %s28, 1
      %p72 = por %p70, %p71
      %p73 = scmp.ne.s32.totalorder %s62, %s63
      %p74 = scmp.eq.s32.totalorder %s28, 0
      %p75 = por %p73, %p74
      %p76 = scmp.ne.s32.totalorder %s62, %s63
      %p77 = scmp.eq.s32.totalorder %s29, 1
      %p78 = por %p76, %p77
      %p80 = scmp.ne.s32.totalorder %s63, %s79
      %p81 = scmp.eq.s32.totalorder %s29, 0
      %p82 = por %p80, %p81
      %s84 = sadd.s32 %s83, 1
      %p87 = scmp.eq.s32.totalorder %s23, 1
      %p88 = scmp.ne.s32.totalorder %s83, %s85
      %p89 = scmp.eq.s32.totalorder %s23, 0
      %p90 = por %p88, %p89
      %p91 = scmp.ne.s32.totalorder %s83, %s85
      %p92 = scmp.eq.s32.totalorder %s28, 1
      %p93 = por %p91, %p92
      %p94 = scmp.ne.s32.totalorder %s85, %s86
      %p95 = scmp.eq.s32.totalorder %s28, 0
      %p96 = por %p94, %p95
      %p97 = scmp.ne.s32.totalorder %s85, %s86
      %p98 = scmp.eq.s32.totalorder %s29, 1
      %p99 = por %p97, %p98
      %p101 = scmp.ne.s32.totalorder %s86, %s100
      %p102 = scmp.eq.s32.totalorder %s29, 0
      %p103 = por %p101, %p102
      %s105 = sadd.s32 %s104, 1
      %p108 = scmp.eq.s32.totalorder %s23, 1
      %p109 = scmp.ne.s32.totalorder %s104, %s106
      %p110 = scmp.eq.s32.totalorder %s23, 0
      %p111 = por %p109, %p110
      %p112 = scmp.ne.s32.totalorder %s104, %s106
      %p113 = scmp.eq.s32.totalorder %s28, 1
      %p114 = por %p112, %p113
      %p115 = scmp.ne.s32.totalorder %s106, %s107
      %p116 = scmp.eq.s32.totalorder %s28, 0
      %p117 = por %p115, %p116
      %p118 = scmp.ne.s32.totalorder %s106, %s107
      %p119 = scmp.eq.s32.totalorder %s29, 1
      %p120 = por %p118, %p119
      %p122 = scmp.ne.s32.totalorder %s107, %s121
      %p123 = scmp.eq.s32.totalorder %s29, 0
      %p124 = por %p122, %p123
      %s126 = sadd.s32 %s125, 1
      %p129 = scmp.eq.s32.totalorder %s23, 1
      %p130 = scmp.ne.s32.totalorder %s125, %s127
      %p131 = scmp.eq.s32.totalorder %s23, 0
      %p132 = por %p130, %p131
      %p133 = scmp.ne.s32.totalorder %s125, %s127
      %p134 = scmp.eq.s32.totalorder %s28, 1
      %p135 = por %p133, %p134
      %p136 = scmp.ne.s32.totalorder %s127, %s128
      %p137 = scmp.eq.s32.totalorder %s28, 0
      %p138 = por %p136, %p137
      %p139 = scmp.ne.s32.totalorder %s127, %s128
      %p140 = scmp.eq.s32.totalorder %s29, 1
      %p141 = por %p139, %p140
      %p143 = scmp.ne.s32.totalorder %s128, %s142
      %p144 = scmp.eq.s32.totalorder %s29, 0
      %p145 = por %p143, %p144
      %s147 = sadd.s32 %s146, 1
      %p150 = scmp.eq.s32.totalorder %s23, 1
      %p151 = scmp.ne.s32.totalorder %s146, %s148
      %p152 = scmp.eq.s32.totalorder %s23, 0
      %p153 = por %p151, %p152
      %p154 = scmp.ne.s32.totalorder %s146, %s148
      %p155 = scmp.eq.s32.totalorder %s28, 1
      %p156 = por %p154, %p155
      %p157 = scmp.ne.s32.totalorder %s148, %s149
      %p158 = scmp.eq.s32.totalorder %s28, 0
      %p159 = por %p157, %p158
      %p160 = scmp.ne.s32.totalorder %s148, %s149
      %p161 = scmp.eq.s32.totalorder %s29, 1
      %p162 = por %p160, %p161
      %p164 = scmp.ne.s32.totalorder %s149, %s163
      %p165 = scmp.eq.s32.totalorder %s29, 0
      %p166 = por %p164, %p165
      %s167 = ssub.s32 %s23, %s30
      %p168 = scmp.eq.s32.totalorder %s167, 0
      %s170 = sadd.s32 %s169, 1
      %s171 = scalar_select %p168, %s169, %s170
      %p174 = pneg %p168
      %p175 = scmp.eq.s32.totalorder %s23, 1
      %p176 = por %p174, %p175
      %p177 = scmp.ne.s32.totalorder %s169, %s172
      %p178 = scmp.eq.s32.totalorder %s23, 0
      %p179 = por %p177, %p178
      %p180 = scmp.ne.s32.totalorder %s169, %s172
      %p181 = scmp.eq.s32.totalorder %s28, 1
      %p182 = por %p180, %p181
      %p183 = scmp.ne.s32.totalorder %s172, %s173
      %p184 = scmp.eq.s32.totalorder %s28, 0
      %p185 = por %p183, %p184
      %p186 = scmp.ne.s32.totalorder %s172, %s173
      %p187 = scmp.eq.s32.totalorder %s29, 1
      %p188 = por %p186, %p187
      %p190 = scmp.ne.s32.totalorder %s173, %s189
      %p191 = scmp.eq.s32.totalorder %s29, 0
      %p192 = por %p190, %p191
      %p193 = scmp.le.s32.totalorder 1, %s23
      %p194 = scmp.lt.s32.totalorder %s23, 3
      %p195 = pnand %p193, %p194
      %p196 = pneg %p195
      // Predicated region
      $region9: #{tpu_custom_call.1} parent=5 // pred_check
        _
      $region10: #{tpu_custom_call.1} parent=5 // pred_check_branch
        %198 = sbr.rel (%p195) target = $region12
      $region11: #{tpu_custom_call.1} parent=5 // pred_region
        %s199 = ssub.s32 %s23, 1
        // Predicated region
        $region13: #{tpu_custom_call.1} parent=11 // pred_check
          %p200 = pneg %p96
        $region14: #{tpu_custom_call.1} parent=11 // pred_check_branch
          %202 = sbr.rel (%p200) target = $region16
        $region15: #{tpu_custom_call.1} parent=11 // pred_region
          %s204 = ssub.s32 1024, 1024
          %205 = vsyncadd [#allocation6], %s204
          %s206 = sshll.u32 [#allocation7], 4
          %s207 = int_to_ptr.vmem [resolvable:$true] %s206
          %212 = dma.hbm_to_vmem [thread:$0]  %s2, 1024, %s207, [#allocation6], 64, 64, 4
        $region16: #{tpu_custom_call.1} parent=11 // pred_fallthru
          _
        // Predicated region
        $region17: #{tpu_custom_call.1} parent=11 // pred_check
          %p213 = pneg %p117
        $region18: #{tpu_custom_call.1} parent=11 // pred_check_branch
          %215 = sbr.rel (%p213) target = $region20
        $region19: #{tpu_custom_call.1} parent=11 // pred_region
          %s217 = ssub.s32 4096, 4096
          %218 = vsyncadd [#allocation9], %s217
          %s219 = sshll.u32 [#allocation8], 4
          %s220 = int_to_ptr.vmem [resolvable:$true] %s219
          %225 = dma.hbm_to_vmem [thread:$0]  %s3, 4096, %s220, [#allocation9], 256, 256, 16
        $region20: #{tpu_custom_call.1} parent=11 // pred_fallthru
          _
        // Predicated region
        $region21: #{tpu_custom_call.1} parent=11 // pred_check
          %p226 = pneg %p138
        $region22: #{tpu_custom_call.1} parent=11 // pred_check_branch
          %228 = sbr.rel (%p226) target = $region24
        $region23: #{tpu_custom_call.1} parent=11 // pred_region
          %s230 = ssub.s32 4096, 4096
          %231 = vsyncadd [#allocation9], %s230
          %s232 = sshll.u32 [#allocation10], 4
          %s233 = int_to_ptr.vmem [resolvable:$true] %s232
          %238 = dma.hbm_to_vmem [thread:$0]  %s4, 4096, %s233, [#allocation9], 64, 64, 4
        $region24: #{tpu_custom_call.1} parent=11 // pred_fallthru
          _
        // Predicated region
        $region25: #{tpu_custom_call.1} parent=11 // pred_check
          %p239 = pneg %p159
        $region26: #{tpu_custom_call.1} parent=11 // pred_check_branch
          %241 = sbr.rel (%p239) target = $region28
        $region27: #{tpu_custom_call.1} parent=11 // pred_region
          %s243 = ssub.s32 512, 512
          %244 = vsyncadd [#allocation12], %s243
          %s246 = sshll.u32 [#allocation11], 4
          %s247 = int_to_ptr.vmem [resolvable:$true] %s246
          %249 = dma.hbm_to_vmem [thread:$0]  %s5, 512, %s247, [#allocation12]
        $region28: #{tpu_custom_call.1} parent=11 // pred_fallthru
          _
      $region12: #{tpu_custom_call.1} parent=5 // pred_fallthru
        _
      %p250 = scmp.lt.s32.totalorder %s23, 2
      // Predicated region
      $region29: #{tpu_custom_call.1} parent=5 // pred_check
        %p251 = pneg %p250
      $region30: #{tpu_custom_call.1} parent=5 // pred_check_branch
        %253 = sbr.rel (%p251) target = $region32
      $region31: #{tpu_custom_call.1} parent=5 // pred_region
        // Predicated region
        $region33: #{tpu_custom_call.1} parent=31 // pred_check
          %p254 = pneg %p43
        $region34: #{tpu_custom_call.1} parent=31 // pred_check_branch
          %256 = sbr.rel (%p254) target = $region36
        $region35: #{tpu_custom_call.1} parent=31 // pred_region
          %s257 = sand.u32 %s33, 1
          %s258 = scalar_lea.sflag [#allocation3], %s257
          %s259 = sand.u32 %s33, 1
          %s260 = smul.addr %s259, 16
          %s261 = scalar_lea.vmem [#allocation2], %s260
          %s262 = smul.u32 2, %s23
          %s264 = ssub.s32 256, 256
          %265 = vsyncadd %s258, %s264
          %s266 = smul.addr %s262, 128
          %s267 = scalar_lea.hbm %s0, %s266
          %s268 = sshll.u32 %s261, 4
          %s269 = int_to_ptr.vmem [resolvable:$true] %s268
          %274 = dma.hbm_to_vmem [thread:$0]  %s267, 256, %s269, %s258, 128, 128, 8
        $region36: #{tpu_custom_call.1} parent=31 // pred_fallthru
          _
        // Predicated region
        $region37: #{tpu_custom_call.1} parent=31 // pred_check
          %p275 = pneg %p69
        $region38: #{tpu_custom_call.1} parent=31 // pred_check_branch
          %277 = sbr.rel (%p275) target = $region40
        $region39: #{tpu_custom_call.1} parent=31 // pred_region
          %s278 = sand.u32 %s23, 1
          %s279 = scalar_lea.sflag [#allocation6], %s278
          %s280 = sand.u32 %s59, 1
          %s281 = smul.addr %s280, 8
          %s282 = scalar_lea.vmem [#allocation5], %s281
          %s283 = smul.u32 2, %s23
          %s285 = ssub.s32 128, 128
          %286 = vsyncadd %s279, %s285
          %s287 = smul.addr %s283, 64
          %s288 = scalar_lea.hbm %s1, %s287
          %s289 = sshll.u32 %s282, 4
          %s290 = int_to_ptr.vmem [resolvable:$true] %s289
          %295 = dma.hbm_to_vmem [thread:$0]  %s288, 128, %s290, %s279, 64, 64, 4
        $region40: #{tpu_custom_call.1} parent=31 // pred_fallthru
          _
      $region32: #{tpu_custom_call.1} parent=5 // pred_fallthru
        _
      %p296 = scmp.le.s32.totalorder 1, %s23
      %p297 = scmp.lt.s32.totalorder %s23, 3
      %p298 = pnand %p296, %p297
      %p299 = pneg %p298
      // Predicated region
      $region41: #{tpu_custom_call.1} parent=5 // pred_check
        _
      $region42: #{tpu_custom_call.1} parent=5 // pred_check_branch
        %301 = sbr.rel (%p298) target = $region44
      $region43: #{tpu_custom_call.1} parent=5 // pred_region
        %s302 = ssub.s32 %s23, 1
        %s303 = sand.u32 %s36, 1
        %s304 = scalar_lea.sflag [#allocation3], %s303
        %s305 = sand.u32 %s36, 1
        %s306 = smul.addr %s305, 16
        %s307 = scalar_lea.vmem [#allocation2], %s306
        // Predicated region
        $region45: #{tpu_custom_call.1} parent=43 // pred_check
          %p308 = pneg %p49
        $region46: #{tpu_custom_call.1} parent=43 // pred_check_branch
          %310 = sbr.rel (%p308) target = $region48
        $region47: #{tpu_custom_call.1} parent=43 // pred_region
          %311 = dma.done %s304, 256
        $region48: #{tpu_custom_call.1} parent=43 // pred_fallthru
          _
        %s312 = sand.u32 %s28, 1
        %s313 = scalar_lea.sflag [#allocation6], %s312
        %s314 = sand.u32 %s62, 1
        %s315 = smul.addr %s314, 8
        %s316 = scalar_lea.vmem [#allocation5], %s315
        // Predicated region
        $region49: #{tpu_custom_call.1} parent=43 // pred_check
          %p317 = pneg %p75
        $region50: #{tpu_custom_call.1} parent=43 // pred_check_branch
          %319 = sbr.rel (%p317) target = $region52
        $region51: #{tpu_custom_call.1} parent=43 // pred_region
          %320 = dma.done %s313, 128
        $region52: #{tpu_custom_call.1} parent=43 // pred_fallthru
          _
        // Predicated region
        $region53: #{tpu_custom_call.1} parent=43 // pred_check
          %p321 = pneg %p96
        $region54: #{tpu_custom_call.1} parent=43 // pred_check_branch
          %323 = sbr.rel (%p321) target = $region56
        $region55: #{tpu_custom_call.1} parent=43 // pred_region
          %324 = dma.done [#allocation6], 1024
        $region56: #{tpu_custom_call.1} parent=43 // pred_fallthru
          _
        // Predicated region
        $region57: #{tpu_custom_call.1} parent=43 // pred_check
          %p325 = pneg %p117
        $region58: #{tpu_custom_call.1} parent=43 // pred_check_branch
          %327 = sbr.rel (%p325) target = $region60
        $region59: #{tpu_custom_call.1} parent=43 // pred_region
          %328 = dma.done [#allocation9], 4096
        $region60: #{tpu_custom_call.1} parent=43 // pred_fallthru
          _
        // Predicated region
        $region61: #{tpu_custom_call.1} parent=43 // pred_check
          %p329 = pneg %p138
        $region62: #{tpu_custom_call.1} parent=43 // pred_check_branch
          %331 = sbr.rel (%p329) target = $region64
        $region63: #{tpu_custom_call.1} parent=43 // pred_region
          %332 = dma.done [#allocation9], 4096
        $region64: #{tpu_custom_call.1} parent=43 // pred_fallthru
          _
        // Predicated region
        $region65: #{tpu_custom_call.1} parent=43 // pred_check
          %p333 = pneg %p159
        $region66: #{tpu_custom_call.1} parent=43 // pred_check_branch
          %335 = sbr.rel (%p333) target = $region68
        $region67: #{tpu_custom_call.1} parent=43 // pred_region
          %336 = dma.done [#allocation12], 512
        $region68: #{tpu_custom_call.1} parent=43 // pred_fallthru
          _
        %s337 = sand.u32 %s36, 1
        %s338 = scalar_lea.sflag [#allocation3], %s337
        %s339 = sand.u32 %s36, 1
        %s340 = smul.addr %s339, 16
        %s341 = scalar_lea.vmem [#allocation2], %s340
        %p342 = pneg %p49
        %p343 = pneg %p46
        %s344 = sand.u32 %s28, 1
        %s345 = scalar_lea.sflag [#allocation6], %s344
        %s346 = sand.u32 %s62, 1
        %s347 = smul.addr %s346, 8
        %s348 = scalar_lea.vmem [#allocation5], %s347
        %p349 = pneg %p75
        %p350 = pneg %p72
        %p351 = pneg %p96
        %p352 = pneg %p93
        %p353 = pneg %p117
        %p354 = pneg %p114
        %p355 = pneg %p138
        %p356 = pneg %p135
        %p357 = pneg %p159
        %p358 = pneg %p156
        %p359 = pneg %p185
        %p360 = pneg %p182
        %s361 = sand.u32 %s172, 1
        %s362 = scalar_lea.sflag [#allocation4], %s361
        %s363 = sand.u32 %s172, 1
        %s364 = smul.addr %s363, 16
        %s365 = scalar_lea.vmem [#allocation13], %s364
        %s366 = smul.u32 2, %s28
        %s367 = smul.u32 2, %s28
        %s368 = smul.u32 2, %s28
        %v370 = vld [vmem:[#allocation11] sm:$0xff]
        %v371 = vld [vmem:[#allocation11 + $0x8] sm:$0xff]
        %v372 = vld [vmem:[#allocation11 + $0x10] sm:$0xff]
        %v373 = vld [vmem:[#allocation11 + $0x18] sm:$0xff]
        %v374 = vld [vmem:[%s307] sm:$0xff]
        %v375 = vld [vmem:[%s307 + $0x8] sm:$0xff]
        %v376 = vld [vmem:[%s316] sm:$0xf]
        %v377 = vld [vmem:[%s316 + $0x4] sm:$0xf]
        %v378 = vld [vmem:[#allocation7] sm:$0xf]
        %v379 = vld [vmem:[#allocation7 + $0x4] sm:$0xf]
        %v380 = vld [vmem:[#allocation7 + $0x8] sm:$0xf]
        %v381 = vld [vmem:[#allocation7 + $0xc] sm:$0xf]
        %v382 = vld [vmem:[#allocation7 + $0x10] sm:$0xf]
        %v383 = vld [vmem:[#allocation7 + $0x14] sm:$0xf]
        %v384 = vld [vmem:[#allocation7 + $0x18] sm:$0xf]
        %v385 = vld [vmem:[#allocation7 + $0x1c] sm:$0xf]
        %v386 = vld [vmem:[#allocation7 + $0x20] sm:$0xf]
        %v387 = vld [vmem:[#allocation7 + $0x24] sm:$0xf]
        %v388 = vld [vmem:[#allocation7 + $0x28] sm:$0xf]
        %v389 = vld [vmem:[#allocation7 + $0x2c] sm:$0xf]
        %v390 = vld [vmem:[#allocation7 + $0x30] sm:$0xf]
        %v391 = vld [vmem:[#allocation7 + $0x34] sm:$0xf]
        %v392 = vld [vmem:[#allocation7 + $0x38] sm:$0xf]
        %v393 = vld [vmem:[#allocation7 + $0x3c] sm:$0xf]
        %v396 = vunpack.c.l.b16 %v376
        %v397 = vunpack.c.l.b16 %v377
        %v398 = vpack.c.b16 %v397, %v396
        %v416 = vunpack.c.l.b16 %v378
        %v417 = vunpack.c.l.b16 %v379
        %v418 = vunpack.c.l.b16 %v380
        %v419 = vunpack.c.l.b16 %v381
        %v420 = vunpack.c.l.b16 %v382
        %v421 = vunpack.c.l.b16 %v383
        %v422 = vunpack.c.l.b16 %v384
        %v423 = vunpack.c.l.b16 %v385
        %v424 = vunpack.c.l.b16 %v386
        %v425 = vunpack.c.l.b16 %v387
        %v426 = vunpack.c.l.b16 %v388
        %v427 = vunpack.c.l.b16 %v389
        %v428 = vunpack.c.l.b16 %v390
        %v429 = vunpack.c.l.b16 %v391
        %v430 = vunpack.c.l.b16 %v392
        %v431 = vunpack.c.l.b16 %v393
        %v432 = vpack.c.b16 %v417, %v416
        %v433 = vpack.c.b16 %v419, %v418
        %v434 = vpack.c.b16 %v421, %v420
        %v435 = vpack.c.b16 %v423, %v422
        %v436 = vpack.c.b16 %v425, %v424
        %v437 = vpack.c.b16 %v427, %v426
        %v438 = vpack.c.b16 %v429, %v428
        %v439 = vpack.c.b16 %v431, %v430
        %448 = vmatprep.subr.bf16.mxu0 0
        %449 = vmatpush1.bf16.msra.mxu0 %v439
        %450 = vmatprep.subr.bf16.mxu0 0
        %451 = vmatpush1.bf16.msra.mxu0 %v438
        %452 = vmatprep.subr.bf16.mxu0 0
        %453 = vmatpush1.bf16.msra.mxu0 %v437
        %454 = vmatprep.subr.bf16.mxu0 0
        %455 = vmatpush1.bf16.msra.mxu0 %v436
        %456 = vmatprep.subr.bf16.mxu0 0
        %457 = vmatpush1.bf16.msra.mxu0 %v435
        %458 = vmatprep.subr.bf16.mxu0 0
        %459 = vmatpush1.bf16.msra.mxu0 %v434
        %460 = vmatprep.subr.bf16.mxu0 0
        %461 = vmatpush1.bf16.msra.mxu0 %v433
        %462 = vmatprep.subr.bf16.mxu0 0
        %463 = vmatpush1.bf16.msra.mxu0 %v432
        %464 = vmatprep.subr.bf16.mxu0 0
        %465 = vmatpush2.bf16.msra.mxu0 0
        %466 = vmatprep.subr.bf16.mxu0 0
        %467 = vmatpush2.bf16.msra.mxu0 0
        %468 = vmatprep.subr.bf16.mxu0 0
        %469 = vmatpush2.bf16.msra.mxu0 0
        %470 = vmatprep.subr.bf16.mxu0 0
        %471 = vmatpush2.bf16.msra.mxu0 0
        %472 = vmatprep.subr.bf16.mxu0 0
        %473 = vmatpush2.bf16.msra.mxu0 0
        %474 = vmatprep.subr.bf16.mxu0 0
        %475 = vmatpush2.bf16.msra.mxu0 0
        %476 = vmatprep.subr.bf16.mxu0 0
        %477 = vmatpush2.bf16.msra.mxu0 0
        %478 = vmatprep.subr.bf16.mxu0 0
        %479 = vmatpush2.bf16.msra.mxu0 0
        %480 = vmatprep.mubr.bf16.mxu0 0
        %481 = vmatmul.mubr.bf16.gmra.mxu0 %v398
        %v482 = vpop.f32.mrf.mxu0
        %v483 = vadd.f32 0.0, %v482
        %v484 = vpop.f32.mrf.mxu0
        %v485 = vpop.f32.mrf.mxu0
        %v486 = vadd.f32 0.0, %v485
        %v487 = vpop.f32.mrf.mxu0
        %488 = vdwg.mxu0
        %v489 = vadd.f32 %v374, %v483
        %v490 = vadd.f32 %v375, %v486
        %v491 = vlaneseq
        %v492 = vshrl.u32 %v491, 7
        %v493 = vsub.s32 0, %v492
        %v494 = vrot.slane %v370, %v493
        %v495 = vadd.f32 %v489, %v494
        %v496 = vadd.f32 %v490, %v494
        %497 = vadd.xlane.f32.xlu0 %v495
        %v498 = vpop.xlane.xlu0 %497
        %499 = vadd.xlane.f32.xlu0 %v496
        %v500 = vpop.xlane.xlu0 %499
        %v501 = vrcp.pop 128.0
        %v502 = vmul.f32 %v498, %v501
        %v503 = vmul.f32 %v500, %v501
        %v504 = vsub.f32 %v495, %v502
        %v505 = vsub.f32 %v496, %v503
        %v506 = vmul.f32 %v504, %v504
        %v507 = vmul.f32 %v505, %v505
        %508 = vadd.xlane.f32.xlu0 %v506
        %v509 = vpop.xlane.xlu0 %508
        %510 = vadd.xlane.f32.xlu0 %v507
        %v511 = vpop.xlane.xlu0 %510
        %v512 = vmul.f32 %v509, %v501
        %v513 = vmul.f32 %v511, %v501
        %v514 = vadd.f32 %v512, 1e-12
        %v515 = vadd.f32 %v513, 1e-12
        %v516 = vrsqrt.pop %v514
        %v517 = vrsqrt.pop %v515
        %v518 = vmul.f32 %v504, %v516
        %v519 = vmul.f32 %v505, %v517
        %v520 = vlaneseq
        %v521 = vshrl.u32 %v520, 7
        %v522 = vsub.s32 1, %v521
        %v523 = vrot.slane %v370, %v522
        %v524 = vmul.f32 %v523, %v518
        %v525 = vmul.f32 %v523, %v519
        %v526 = vlaneseq
        %v527 = vshrl.u32 %v526, 7
        %v528 = vsub.s32 2, %v527
        %v529 = vrot.slane %v370, %v528
        %v530 = vadd.f32 %v524, %v529
        %v531 = vadd.f32 %v525, %v529
        %v532 = vpack.c.bf16 %v531, %v530
        %v533 = vld [vmem:[#allocation8] sm:$0xff]
        %v534 = vld [vmem:[#allocation8 + $0x8] sm:$0xff]
        %v535 = vld [vmem:[#allocation8 + $0x10] sm:$0xff]
        %v536 = vld [vmem:[#allocation8 + $0x18] sm:$0xff]
        %v537 = vld [vmem:[#allocation8 + $0x20] sm:$0xff]
        %v538 = vld [vmem:[#allocation8 + $0x28] sm:$0xff]
        %v539 = vld [vmem:[#allocation8 + $0x30] sm:$0xff]
        %v540 = vld [vmem:[#allocation8 + $0x38] sm:$0xff]
        %v541 = vld [vmem:[#allocation8 + $0x40] sm:$0xff]
        %v542 = vld [vmem:[#allocation8 + $0x48] sm:$0xff]
        %v543 = vld [vmem:[#allocation8 + $0x50] sm:$0xff]
        %v544 = vld [vmem:[#allocation8 + $0x58] sm:$0xff]
        %v545 = vld [vmem:[#allocation8 + $0x60] sm:$0xff]
        %v546 = vld [vmem:[#allocation8 + $0x68] sm:$0xff]
        %v547 = vld [vmem:[#allocation8 + $0x70] sm:$0xff]
        %v548 = vld [vmem:[#allocation8 + $0x78] sm:$0xff]
        %v549 = vld [vmem:[#allocation8 + $0x80] sm:$0xff]
        %v550 = vld [vmem:[#allocation8 + $0x88] sm:$0xff]
        %v551 = vld [vmem:[#allocation8 + $0x90] sm:$0xff]
        %v552 = vld [vmem:[#allocation8 + $0x98] sm:$0xff]
        %v553 = vld [vmem:[#allocation8 + $0xa0] sm:$0xff]
        %v554 = vld [vmem:[#allocation8 + $0xa8] sm:$0xff]
        %v555 = vld [vmem:[#allocation8 + $0xb0] sm:$0xff]
        %v556 = vld [vmem:[#allocation8 + $0xb8] sm:$0xff]
        %v557 = vld [vmem:[#allocation8 + $0xc0] sm:$0xff]
        %v558 = vld [vmem:[#allocation8 + $0xc8] sm:$0xff]
        %v559 = vld [vmem:[#allocation8 + $0xd0] sm:$0xff]
        %v560 = vld [vmem:[#allocation8 + $0xd8] sm:$0xff]
        %v561 = vld [vmem:[#allocation8 + $0xe0] sm:$0xff]
        %v562 = vld [vmem:[#allocation8 + $0xe8] sm:$0xff]
        %v563 = vld [vmem:[#allocation8 + $0xf0] sm:$0xff]
        %v564 = vld [vmem:[#allocation8 + $0xf8] sm:$0xff]
        %v565 = vlaneseq
        %v566 = vshrl.u32 %v565, 7
        %v567 = vsub.s32 6, %v566
        %v568 = vrot.slane %v370, %v567
        %v569 = vlaneseq
        %v570 = vshrl.u32 %v569, 7
        %v571 = vsub.s32 6, %v570
        %v572 = vrot.slane %v371, %v571
        %v573 = vlaneseq
        %v574 = vshrl.u32 %v573, 7
        %v575 = vsub.s32 6, %v574
        %v576 = vrot.slane %v372, %v575
        %v577 = vlaneseq
        %v578 = vshrl.u32 %v577, 7
        %v579 = vsub.s32 6, %v578
        %v580 = vrot.slane %v373, %v579
        %v613 = vunpack.c.l.b16 %v533
        %v614 = vunpack.c.h.b16 %v533
        %v615 = vunpack.c.l.b16 %v534
        %v616 = vunpack.c.h.b16 %v534
        %v617 = vunpack.c.l.b16 %v535
        %v618 = vunpack.c.h.b16 %v535
        %v619 = vunpack.c.l.b16 %v536
        %v620 = vunpack.c.h.b16 %v536
        %v621 = vunpack.c.l.b16 %v537
        %v622 = vunpack.c.h.b16 %v537
        %v623 = vunpack.c.l.b16 %v538
        %v624 = vunpack.c.h.b16 %v538
        %v625 = vunpack.c.l.b16 %v539
        %v626 = vunpack.c.h.b16 %v539
        %v627 = vunpack.c.l.b16 %v540
        %v628 = vunpack.c.h.b16 %v540
        %v629 = vunpack.c.l.b16 %v541
        %v630 = vunpack.c.h.b16 %v541
        %v631 = vunpack.c.l.b16 %v542
        %v632 = vunpack.c.h.b16 %v542
        %v633 = vunpack.c.l.b16 %v543
        %v634 = vunpack.c.h.b16 %v543
        %v635 = vunpack.c.l.b16 %v544
        %v636 = vunpack.c.h.b16 %v544
        %v637 = vunpack.c.l.b16 %v545
        %v638 = vunpack.c.h.b16 %v545
        %v639 = vunpack.c.l.b16 %v546
        %v640 = vunpack.c.h.b16 %v546
        %v641 = vunpack.c.l.b16 %v547
        %v642 = vunpack.c.h.b16 %v547
        %v643 = vunpack.c.l.b16 %v548
        %v644 = vunpack.c.h.b16 %v548
        %v645 = vunpack.c.l.b16 %v549
        %v646 = vunpack.c.h.b16 %v549
        %v647 = vunpack.c.l.b16 %v550
        %v648 = vunpack.c.h.b16 %v550
        %v649 = vunpack.c.l.b16 %v551
        %v650 = vunpack.c.h.b16 %v551
        %v651 = vunpack.c.l.b16 %v552
        %v652 = vunpack.c.h.b16 %v552
        %v653 = vunpack.c.l.b16 %v553
        %v654 = vunpack.c.h.b16 %v553
        %v655 = vunpack.c.l.b16 %v554
        %v656 = vunpack.c.h.b16 %v554
        %v657 = vunpack.c.l.b16 %v555
        %v658 = vunpack.c.h.b16 %v555
        %v659 = vunpack.c.l.b16 %v556
        %v660 = vunpack.c.h.b16 %v556
        %v661 = vunpack.c.l.b16 %v557
        %v662 = vunpack.c.h.b16 %v557
        %v663 = vunpack.c.l.b16 %v558
        %v664 = vunpack.c.h.b16 %v558
        %v665 = vunpack.c.l.b16 %v559
        %v666 = vunpack.c.h.b16 %v559
        %v667 = vunpack.c.l.b16 %v560
        %v668 = vunpack.c.h.b16 %v560
        %v669 = vunpack.c.l.b16 %v561
        %v670 = vunpack.c.h.b16 %v561
        %v671 = vunpack.c.l.b16 %v562
        %v672 = vunpack.c.h.b16 %v562
        %v673 = vunpack.c.l.b16 %v563
        %v674 = vunpack.c.h.b16 %v563
        %v675 = vunpack.c.l.b16 %v564
        %v676 = vunpack.c.h.b16 %v564
        %v677 = vpack.c.b16 %v617, %v613
        %v678 = vpack.c.b16 %v618, %v614
        %v679 = vpack.c.b16 %v619, %v615
        %v680 = vpack.c.b16 %v620, %v616
        %v681 = vpack.c.b16 %v625, %v621
        %v682 = vpack.c.b16 %v626, %v622
        %v683 = vpack.c.b16 %v627, %v623
        %v684 = vpack.c.b16 %v628, %v624
        %v685 = vpack.c.b16 %v633, %v629
        %v686 = vpack.c.b16 %v634, %v630
        %v687 = vpack.c.b16 %v635, %v631
        %v688 = vpack.c.b16 %v636, %v632
        %v689 = vpack.c.b16 %v641, %v637
        %v690 = vpack.c.b16 %v642, %v638
        %v691 = vpack.c.b16 %v643, %v639
        %v692 = vpack.c.b16 %v644, %v640
        %v693 = vpack.c.b16 %v649, %v645
        %v694 = vpack.c.b16 %v650, %v646
        %v695 = vpack.c.b16 %v651, %v647
        %v696 = vpack.c.b16 %v652, %v648
        %v697 = vpack.c.b16 %v657, %v653
        %v698 = vpack.c.b16 %v658, %v654
        %v699 = vpack.c.b16 %v659, %v655
        %v700 = vpack.c.b16 %v660, %v656
        %v701 = vpack.c.b16 %v665, %v661
        %v702 = vpack.c.b16 %v666, %v662
        %v703 = vpack.c.b16 %v667, %v663
        %v704 = vpack.c.b16 %v668, %v664
        %v705 = vpack.c.b16 %v673, %v669
        %v706 = vpack.c.b16 %v674, %v670
        %v707 = vpack.c.b16 %v675, %v671
        %v708 = vpack.c.b16 %v676, %v672
        %741 = vmatprep.subr.bf16.mxu0 %v706
        %742 = vmatpush1.bf16.msra.mxu0 %v705
        %743 = vmatprep.subr.bf16.mxu0 %v702
        %744 = vmatpush1.bf16.msra.mxu0 %v701
        %745 = vmatprep.subr.bf16.mxu0 %v698
        %746 = vmatpush1.bf16.msra.mxu0 %v697
        %747 = vmatprep.subr.bf16.mxu0 %v694
        %748 = vmatpush1.bf16.msra.mxu0 %v693
        %749 = vmatprep.subr.bf16.mxu0 %v690
        %750 = vmatpush1.bf16.msra.mxu0 %v689
        %751 = vmatprep.subr.bf16.mxu0 %v686
        %752 = vmatpush1.bf16.msra.mxu0 %v685
        %753 = vmatprep.subr.bf16.mxu0 %v682
        %754 = vmatpush1.bf16.msra.mxu0 %v681
        %755 = vmatprep.subr.bf16.mxu0 %v678
        %756 = vmatpush1.bf16.msra.mxu0 %v677
        %757 = vmatprep.subr.bf16.mxu0 0
        %758 = vmatpush2.bf16.msra.mxu0 0
        %759 = vmatprep.subr.bf16.mxu0 0
        %760 = vmatpush2.bf16.msra.mxu0 0
        %761 = vmatprep.subr.bf16.mxu0 0
        %762 = vmatpush2.bf16.msra.mxu0 0
        %763 = vmatprep.subr.bf16.mxu0 0
        %764 = vmatpush2.bf16.msra.mxu0 0
        %765 = vmatprep.subr.bf16.mxu0 0
        %766 = vmatpush2.bf16.msra.mxu0 0
        %767 = vmatprep.subr.bf16.mxu0 0
        %768 = vmatpush2.bf16.msra.mxu0 0
        %769 = vmatprep.subr.bf16.mxu0 0
        %770 = vmatpush2.bf16.msra.mxu0 0
        %771 = vmatprep.subr.bf16.mxu0 0
        %772 = vmatpush2.bf16.msra.mxu0 0
        %773 = vmatprep.mubr.bf16.mxu0 0
        %774 = vmatmul.mubr.bf16.gmra.mxu0 %v532
        %v775 = vpop.f32.mrf.mxu0
        %v776 = vadd.f32 %v568, %v775
        %v777 = vpop.f32.mrf.mxu0
        %v778 = vadd.f32 %v572, %v777
        %v779 = vpop.f32.mrf.mxu0
        %v780 = vadd.f32 %v568, %v779
        %v781 = vpop.f32.mrf.mxu0
        %v782 = vadd.f32 %v572, %v781
        %783 = vdwg.mxu0
        %784 = vmatprep.subr.bf16.mxu0 %v708
        %785 = vmatpush1.bf16.msra.mxu0 %v707
        %786 = vmatprep.subr.bf16.mxu0 %v704
        %787 = vmatpush1.bf16.msra.mxu0 %v703
        %788 = vmatprep.subr.bf16.mxu0 %v700
        %789 = vmatpush1.bf16.msra.mxu0 %v699
        %790 = vmatprep.subr.bf16.mxu0 %v696
        %791 = vmatpush1.bf16.msra.mxu0 %v695
        %792 = vmatprep.subr.bf16.mxu0 %v692
        %793 = vmatpush1.bf16.msra.mxu0 %v691
        %794 = vmatprep.subr.bf16.mxu0 %v688
        %795 = vmatpush1.bf16.msra.mxu0 %v687
        %796 = vmatprep.subr.bf16.mxu0 %v684
        %797 = vmatpush1.bf16.msra.mxu0 %v683
        %798 = vmatprep.subr.bf16.mxu0 %v680
        %799 = vmatpush1.bf16.msra.mxu0 %v679
        %800 = vmatprep.subr.bf16.mxu0 0
        %801 = vmatpush2.bf16.msra.mxu0 0
        %802 = vmatprep.subr.bf16.mxu0 0
        %803 = vmatpush2.bf16.msra.mxu0 0
        %804 = vmatprep.subr.bf16.mxu0 0
        %805 = vmatpush2.bf16.msra.mxu0 0
        %806 = vmatprep.subr.bf16.mxu0 0
        %807 = vmatpush2.bf16.msra.mxu0 0
        %808 = vmatprep.subr.bf16.mxu0 0
        %809 = vmatpush2.bf16.msra.mxu0 0
        %810 = vmatprep.subr.bf16.mxu0 0
        %811 = vmatpush2.bf16.msra.mxu0 0
        %812 = vmatprep.subr.bf16.mxu0 0
        %813 = vmatpush2.bf16.msra.mxu0 0
        %814 = vmatprep.subr.bf16.mxu0 0
        %815 = vmatpush2.bf16.msra.mxu0 0
        %816 = vmatprep.mubr.bf16.mxu0 0
        %817 = vmatmul.mubr.bf16.gmra.mxu0 %v532
        %v818 = vpop.f32.mrf.mxu0
        %v819 = vadd.f32 %v576, %v818
        %v820 = vpop.f32.mrf.mxu0
        %v821 = vadd.f32 %v580, %v820
        %v822 = vpop.f32.mrf.mxu0
        %v823 = vadd.f32 %v576, %v822
        %v824 = vpop.f32.mrf.mxu0
        %v825 = vadd.f32 %v580, %v824
        %826 = vdwg.mxu0
        %v827 = vmul.f32 %v776, 0.5
        %v828 = vmul.f32 %v778, 0.5
        %v829 = vmul.f32 %v819, 0.5
        %v830 = vmul.f32 %v821, 0.5
        %v831 = vmul.f32 %v780, 0.5
        %v832 = vmul.f32 %v782, 0.5
        %v833 = vmul.f32 %v823, 0.5
        %v834 = vmul.f32 %v825, 0.5
        %v835 = vmul.f32 %v776, 0.044715
        %v836 = vmul.f32 %v778, 0.044715
        %v837 = vmul.f32 %v819, 0.044715
        %v838 = vmul.f32 %v821, 0.044715
        %v839 = vmul.f32 %v780, 0.044715
        %v840 = vmul.f32 %v782, 0.044715
        %v841 = vmul.f32 %v823, 0.044715
        %v842 = vmul.f32 %v825, 0.044715
        %v843 = vmul.f32 %v835, %v776
        %v844 = vmul.f32 %v836, %v778
        %v845 = vmul.f32 %v837, %v819
        %v846 = vmul.f32 %v838, %v821
        %v847 = vmul.f32 %v839, %v780
        %v848 = vmul.f32 %v840, %v782
        %v849 = vmul.f32 %v841, %v823
        %v850 = vmul.f32 %v842, %v825
        %v851 = vmul.f32 %v843, %v776
        %v852 = vmul.f32 %v844, %v778
        %v853 = vmul.f32 %v845, %v819
        %v854 = vmul.f32 %v846, %v821
        %v855 = vmul.f32 %v847, %v780
        %v856 = vmul.f32 %v848, %v782
        %v857 = vmul.f32 %v849, %v823
        %v858 = vmul.f32 %v850, %v825
        %v859 = vadd.f32 %v776, %v851
        %v860 = vadd.f32 %v778, %v852
        %v861 = vadd.f32 %v819, %v853
        %v862 = vadd.f32 %v821, %v854
        %v863 = vadd.f32 %v780, %v855
        %v864 = vadd.f32 %v782, %v856
        %v865 = vadd.f32 %v823, %v857
        %v866 = vadd.f32 %v825, %v858
        %v867 = vmul.f32 %v859, 0.7978846
        %v868 = vmul.f32 %v860, 0.7978846
        %v869 = vmul.f32 %v861, 0.7978846
        %v870 = vmul.f32 %v862, 0.7978846
        %v871 = vmul.f32 %v863, 0.7978846
        %v872 = vmul.f32 %v864, 0.7978846
        %v873 = vmul.f32 %v865, 0.7978846
        %v874 = vmul.f32 %v866, 0.7978846
        %v875 = vtanh.pop %v867
        %v876 = vtanh.pop %v868
        %v877 = vtanh.pop %v869
        %v878 = vtanh.pop %v870
        %v879 = vtanh.pop %v871
        %v880 = vtanh.pop %v872
        %v881 = vtanh.pop %v873
        %v882 = vtanh.pop %v874
        %v883 = vadd.f32 %v875, 1.0
        %v884 = vadd.f32 %v876, 1.0
        %v885 = vadd.f32 %v877, 1.0
        %v886 = vadd.f32 %v878, 1.0
        %v887 = vadd.f32 %v879, 1.0
        %v888 = vadd.f32 %v880, 1.0
        %v889 = vadd.f32 %v881, 1.0
        %v890 = vadd.f32 %v882, 1.0
        %v891 = vmul.f32 %v827, %v883
        %v892 = vmul.f32 %v828, %v884
        %v893 = vmul.f32 %v829, %v885
        %v894 = vmul.f32 %v830, %v886
        %v895 = vmul.f32 %v831, %v887
        %v896 = vmul.f32 %v832, %v888
        %v897 = vmul.f32 %v833, %v889
        %v898 = vmul.f32 %v834, %v890
        %v899 = vpack.c.bf16 %v895, %v891
        %v900 = vpack.c.bf16 %v896, %v892
        %v901 = vpack.c.bf16 %v897, %v893
        %v902 = vpack.c.bf16 %v898, %v894
        %v903 = vld [vmem:[#allocation10] sm:$0xf]
        %v904 = vld [vmem:[#allocation10 + $0x4] sm:$0xf]
        %v905 = vld [vmem:[#allocation10 + $0x8] sm:$0xf]
        %v906 = vld [vmem:[#allocation10 + $0xc] sm:$0xf]
        %v907 = vld [vmem:[#allocation10 + $0x10] sm:$0xf]
        %v908 = vld [vmem:[#allocation10 + $0x14] sm:$0xf]
        %v909 = vld [vmem:[#allocation10 + $0x18] sm:$0xf]
        %v910 = vld [vmem:[#allocation10 + $0x1c] sm:$0xf]
        %v911 = vld [vmem:[#allocation10 + $0x20] sm:$0xf]
        %v912 = vld [vmem:[#allocation10 + $0x24] sm:$0xf]
        %v913 = vld [vmem:[#allocation10 + $0x28] sm:$0xf]
        %v914 = vld [vmem:[#allocation10 + $0x2c] sm:$0xf]
        %v915 = vld [vmem:[#allocation10 + $0x30] sm:$0xf]
        %v916 = vld [vmem:[#allocation10 + $0x34] sm:$0xf]
        %v917 = vld [vmem:[#allocation10 + $0x38] sm:$0xf]
        %v918 = vld [vmem:[#allocation10 + $0x3c] sm:$0xf]
        %v919 = vld [vmem:[#allocation10 + $0x40] sm:$0xf]
        %v920 = vld [vmem:[#allocation10 + $0x44] sm:$0xf]
        %v921 = vld [vmem:[#allocation10 + $0x48] sm:$0xf]
        %v922 = vld [vmem:[#allocation10 + $0x4c] sm:$0xf]
        %v923 = vld [vmem:[#allocation10 + $0x50] sm:$0xf]
        %v924 = vld [vmem:[#allocation10 + $0x54] sm:$0xf]
        %v925 = vld [vmem:[#allocation10 + $0x58] sm:$0xf]
        %v926 = vld [vmem:[#allocation10 + $0x5c] sm:$0xf]
        %v927 = vld [vmem:[#allocation10 + $0x60] sm:$0xf]
        %v928 = vld [vmem:[#allocation10 + $0x64] sm:$0xf]
        %v929 = vld [vmem:[#allocation10 + $0x68] sm:$0xf]
        %v930 = vld [vmem:[#allocation10 + $0x6c] sm:$0xf]
        %v931 = vld [vmem:[#allocation10 + $0x70] sm:$0xf]
        %v932 = vld [vmem:[#allocation10 + $0x74] sm:$0xf]
        %v933 = vld [vmem:[#allocation10 + $0x78] sm:$0xf]
        %v934 = vld [vmem:[#allocation10 + $0x7c] sm:$0xf]
        %v935 = vld [vmem:[#allocation10 + $0x80] sm:$0xf]
        %v936 = vld [vmem:[#allocation10 + $0x84] sm:$0xf]
        %v937 = vld [vmem:[#allocation10 + $0x88] sm:$0xf]
        %v938 = vld [vmem:[#allocation10 + $0x8c] sm:$0xf]
        %v939 = vld [vmem:[#allocation10 + $0x90] sm:$0xf]
        %v940 = vld [vmem:[#allocation10 + $0x94] sm:$0xf]
        %v941 = vld [vmem:[#allocation10 + $0x98] sm:$0xf]
        %v942 = vld [vmem:[#allocation10 + $0x9c] sm:$0xf]
        %v943 = vld [vmem:[#allocation10 + $0xa0] sm:$0xf]
        %v944 = vld [vmem:[#allocation10 + $0xa4] sm:$0xf]
        %v945 = vld [vmem:[#allocation10 + $0xa8] sm:$0xf]
        %v946 = vld [vmem:[#allocation10 + $0xac] sm:$0xf]
        %v947 = vld [vmem:[#allocation10 + $0xb0] sm:$0xf]
        %v948 = vld [vmem:[#allocation10 + $0xb4] sm:$0xf]
        %v949 = vld [vmem:[#allocation10 + $0xb8] sm:$0xf]
        %v950 = vld [vmem:[#allocation10 + $0xbc] sm:$0xf]
        %v951 = vld [vmem:[#allocation10 + $0xc0] sm:$0xf]
        %v952 = vld [vmem:[#allocation10 + $0xc4] sm:$0xf]
        %v953 = vld [vmem:[#allocation10 + $0xc8] sm:$0xf]
        %v954 = vld [vmem:[#allocation10 + $0xcc] sm:$0xf]
        %v955 = vld [vmem:[#allocation10 + $0xd0] sm:$0xf]
        %v956 = vld [vmem:[#allocation10 + $0xd4] sm:$0xf]
        %v957 = vld [vmem:[#allocation10 + $0xd8] sm:$0xf]
        %v958 = vld [vmem:[#allocation10 + $0xdc] sm:$0xf]
        %v959 = vld [vmem:[#allocation10 + $0xe0] sm:$0xf]
        %v960 = vld [vmem:[#allocation10 + $0xe4] sm:$0xf]
        %v961 = vld [vmem:[#allocation10 + $0xe8] sm:$0xf]
        %v962 = vld [vmem:[#allocation10 + $0xec] sm:$0xf]
        %v963 = vld [vmem:[#allocation10 + $0xf0] sm:$0xf]
        %v964 = vld [vmem:[#allocation10 + $0xf4] sm:$0xf]
        %v965 = vld [vmem:[#allocation10 + $0xf8] sm:$0xf]
        %v966 = vld [vmem:[#allocation10 + $0xfc] sm:$0xf]
        %v967 = vlaneseq
        %v968 = vshrl.u32 %v967, 7
        %v969 = vsub.s32 3, %v968
        %v970 = vrot.slane %v370, %v969
        %v1035 = vunpack.c.l.b16 %v903
        %v1036 = vunpack.c.l.b16 %v904
        %v1037 = vunpack.c.l.b16 %v905
        %v1038 = vunpack.c.l.b16 %v906
        %v1039 = vunpack.c.l.b16 %v907
        %v1040 = vunpack.c.l.b16 %v908
        %v1041 = vunpack.c.l.b16 %v909
        %v1042 = vunpack.c.l.b16 %v910
        %v1043 = vunpack.c.l.b16 %v911
        %v1044 = vunpack.c.l.b16 %v912
        %v1045 = vunpack.c.l.b16 %v913
        %v1046 = vunpack.c.l.b16 %v914
        %v1047 = vunpack.c.l.b16 %v915
        %v1048 = vunpack.c.l.b16 %v916
        %v1049 = vunpack.c.l.b16 %v917
        %v1050 = vunpack.c.l.b16 %v918
        %v1051 = vunpack.c.l.b16 %v919
        %v1052 = vunpack.c.l.b16 %v920
        %v1053 = vunpack.c.l.b16 %v921
        %v1054 = vunpack.c.l.b16 %v922
        %v1055 = vunpack.c.l.b16 %v923
        %v1056 = vunpack.c.l.b16 %v924
        %v1057 = vunpack.c.l.b16 %v925
        %v1058 = vunpack.c.l.b16 %v926
        %v1059 = vunpack.c.l.b16 %v927
        %v1060 = vunpack.c.l.b16 %v928
        %v1061 = vunpack.c.l.b16 %v929
        %v1062 = vunpack.c.l.b16 %v930
        %v1063 = vunpack.c.l.b16 %v931
        %v1064 = vunpack.c.l.b16 %v932
        %v1065 = vunpack.c.l.b16 %v933
        %v1066 = vunpack.c.l.b16 %v934
        %v1067 = vunpack.c.l.b16 %v935
        %v1068 = vunpack.c.l.b16 %v936
        %v1069 = vunpack.c.l.b16 %v937
        %v1070 = vunpack.c.l.b16 %v938
        %v1071 = vunpack.c.l.b16 %v939
        %v1072 = vunpack.c.l.b16 %v940
        %v1073 = vunpack.c.l.b16 %v941
        %v1074 = vunpack.c.l.b16 %v942
        %v1075 = vunpack.c.l.b16 %v943
        %v1076 = vunpack.c.l.b16 %v944
        %v1077 = vunpack.c.l.b16 %v945
        %v1078 = vunpack.c.l.b16 %v946
        %v1079 = vunpack.c.l.b16 %v947
        %v1080 = vunpack.c.l.b16 %v948
        %v1081 = vunpack.c.l.b16 %v949
        %v1082 = vunpack.c.l.b16 %v950
        %v1083 = vunpack.c.l.b16 %v951
        %v1084 = vunpack.c.l.b16 %v952
        %v1085 = vunpack.c.l.b16 %v953
        %v1086 = vunpack.c.l.b16 %v954
        %v1087 = vunpack.c.l.b16 %v955
        %v1088 = vunpack.c.l.b16 %v956
        %v1089 = vunpack.c.l.b16 %v957
        %v1090 = vunpack.c.l.b16 %v958
        %v1091 = vunpack.c.l.b16 %v959
        %v1092 = vunpack.c.l.b16 %v960
        %v1093 = vunpack.c.l.b16 %v961
        %v1094 = vunpack.c.l.b16 %v962
        %v1095 = vunpack.c.l.b16 %v963
        %v1096 = vunpack.c.l.b16 %v964
        %v1097 = vunpack.c.l.b16 %v965
        %v1098 = vunpack.c.l.b16 %v966
        %v1099 = vpack.c.b16 %v1036, %v1035
        %v1100 = vpack.c.b16 %v1038, %v1037
        %v1101 = vpack.c.b16 %v1040, %v1039
        %v1102 = vpack.c.b16 %v1042, %v1041
        %v1103 = vpack.c.b16 %v1044, %v1043
        %v1104 = vpack.c.b16 %v1046, %v1045
        %v1105 = vpack.c.b16 %v1048, %v1047
        %v1106 = vpack.c.b16 %v1050, %v1049
        %v1107 = vpack.c.b16 %v1052, %v1051
        %v1108 = vpack.c.b16 %v1054, %v1053
        %v1109 = vpack.c.b16 %v1056, %v1055
        %v1110 = vpack.c.b16 %v1058, %v1057
        %v1111 = vpack.c.b16 %v1060, %v1059
        %v1112 = vpack.c.b16 %v1062, %v1061
        %v1113 = vpack.c.b16 %v1064, %v1063
        %v1114 = vpack.c.b16 %v1066, %v1065
        %v1115 = vpack.c.b16 %v1068, %v1067
        %v1116 = vpack.c.b16 %v1070, %v1069
        %v1117 = vpack.c.b16 %v1072, %v1071
        %v1118 = vpack.c.b16 %v1074, %v1073
        %v1119 = vpack.c.b16 %v1076, %v1075
        %v1120 = vpack.c.b16 %v1078, %v1077
        %v1121 = vpack.c.b16 %v1080, %v1079
        %v1122 = vpack.c.b16 %v1082, %v1081
        %v1123 = vpack.c.b16 %v1084, %v1083
        %v1124 = vpack.c.b16 %v1086, %v1085
        %v1125 = vpack.c.b16 %v1088, %v1087
        %v1126 = vpack.c.b16 %v1090, %v1089
        %v1127 = vpack.c.b16 %v1092, %v1091
        %v1128 = vpack.c.b16 %v1094, %v1093
        %v1129 = vpack.c.b16 %v1096, %v1095
        %v1130 = vpack.c.b16 %v1098, %v1097
        %1163 = vmatprep.subr.bf16.mxu0 0
        %1164 = vmatpush1.bf16.msra.mxu0 %v1106
        %1165 = vmatprep.subr.bf16.mxu0 0
        %1166 = vmatpush1.bf16.msra.mxu0 %v1105
        %1167 = vmatprep.subr.bf16.mxu0 0
        %1168 = vmatpush1.bf16.msra.mxu0 %v1104
        %1169 = vmatprep.subr.bf16.mxu0 0
        %1170 = vmatpush1.bf16.msra.mxu0 %v1103
        %1171 = vmatprep.subr.bf16.mxu0 0
        %1172 = vmatpush1.bf16.msra.mxu0 %v1102
        %1173 = vmatprep.subr.bf16.mxu0 0
        %1174 = vmatpush1.bf16.msra.mxu0 %v1101
        %1175 = vmatprep.subr.bf16.mxu0 0
        %1176 = vmatpush1.bf16.msra.mxu0 %v1100
        %1177 = vmatprep.subr.bf16.mxu0 0
        %1178 = vmatpush1.bf16.msra.mxu0 %v1099
        %1179 = vmatprep.subr.bf16.mxu0 0
        %1180 = vmatpush2.bf16.msra.mxu0 %v1114
        %1181 = vmatprep.subr.bf16.mxu0 0
        %1182 = vmatpush2.bf16.msra.mxu0 %v1113
        %1183 = vmatprep.subr.bf16.mxu0 0
        %1184 = vmatpush2.bf16.msra.mxu0 %v1112
        %1185 = vmatprep.subr.bf16.mxu0 0
        %1186 = vmatpush2.bf16.msra.mxu0 %v1111
        %1187 = vmatprep.subr.bf16.mxu0 0
        %1188 = vmatpush2.bf16.msra.mxu0 %v1110
        %1189 = vmatprep.subr.bf16.mxu0 0
        %1190 = vmatpush2.bf16.msra.mxu0 %v1109
        %1191 = vmatprep.subr.bf16.mxu0 0
        %1192 = vmatpush2.bf16.msra.mxu0 %v1108
        %1193 = vmatprep.subr.bf16.mxu0 0
        %1194 = vmatpush2.bf16.msra.mxu0 %v1107
        %1195 = vmatprep.mubr.bf16.mxu0 %v900
        %1196 = vmatmul.mubr.bf16.gmra.mxu0 %v899
        %v1197 = vpop.f32.mrf.mxu0
        %v1198 = vadd.f32 %v970, %v1197
        %v1199 = vpop.f32.mrf.mxu0
        %v1200 = vpop.f32.mrf.mxu0
        %v1201 = vadd.f32 %v970, %v1200
        %v1202 = vpop.f32.mrf.mxu0
        %1203 = vdwg.mxu0
        %1204 = vmatprep.subr.bf16.mxu0 0
        %1205 = vmatpush1.bf16.msra.mxu0 %v1122
        %1206 = vmatprep.subr.bf16.mxu0 0
        %1207 = vmatpush1.bf16.msra.mxu0 %v1121
        %1208 = vmatprep.subr.bf16.mxu0 0
        %1209 = vmatpush1.bf16.msra.mxu0 %v1120
        %1210 = vmatprep.subr.bf16.mxu0 0
        %1211 = vmatpush1.bf16.msra.mxu0 %v1119
        %1212 = vmatprep.subr.bf16.mxu0 0
        %1213 = vmatpush1.bf16.msra.mxu0 %v1118
        %1214 = vmatprep.subr.bf16.mxu0 0
        %1215 = vmatpush1.bf16.msra.mxu0 %v1117
        %1216 = vmatprep.subr.bf16.mxu0 0
        %1217 = vmatpush1.bf16.msra.mxu0 %v1116
        %1218 = vmatprep.subr.bf16.mxu0 0
        %1219 = vmatpush1.bf16.msra.mxu0 %v1115
        %1220 = vmatprep.subr.bf16.mxu0 0
        %1221 = vmatpush2.bf16.msra.mxu0 %v1130
        %1222 = vmatprep.subr.bf16.mxu0 0
        %1223 = vmatpush2.bf16.msra.mxu0 %v1129
        %1224 = vmatprep.subr.bf16.mxu0 0
        %1225 = vmatpush2.bf16.msra.mxu0 %v1128
        %1226 = vmatprep.subr.bf16.mxu0 0
        %1227 = vmatpush2.bf16.msra.mxu0 %v1127
        %1228 = vmatprep.subr.bf16.mxu0 0
        %1229 = vmatpush2.bf16.msra.mxu0 %v1126
        %1230 = vmatprep.subr.bf16.mxu0 0
        %1231 = vmatpush2.bf16.msra.mxu0 %v1125
        %1232 = vmatprep.subr.bf16.mxu0 0
        %1233 = vmatpush2.bf16.msra.mxu0 %v1124
        %1234 = vmatprep.subr.bf16.mxu0 0
        %1235 = vmatpush2.bf16.msra.mxu0 %v1123
        %1236 = vmatprep.mubr.bf16.mxu0 %v902
        %1237 = vmatmul.mubr.bf16.gmra.mxu0 %v901
        %v1238 = vpop.f32.mrf.mxu0
        %v1239 = vadd.f32 %v1198, %v1238
        %v1240 = vpop.f32.mrf.mxu0
        %v1241 = vpop.f32.mrf.mxu0
        %v1242 = vadd.f32 %v1201, %v1241
        %v1243 = vpop.f32.mrf.mxu0
        %1244 = vdwg.mxu0
        %v1245 = vadd.f32 %v530, %v1239
        %v1246 = vadd.f32 %v531, %v1242
        %1247 = vadd.xlane.f32.xlu0 %v1245
        %v1248 = vpop.xlane.xlu0 %1247
        %1249 = vadd.xlane.f32.xlu0 %v1246
        %v1250 = vpop.xlane.xlu0 %1249
        %v1251 = vmul.f32 %v1248, %v501
        %v1252 = vmul.f32 %v1250, %v501
        %v1253 = vsub.f32 %v1245, %v1251
        %v1254 = vsub.f32 %v1246, %v1252
        %v1255 = vmul.f32 %v1253, %v1253
        %v1256 = vmul.f32 %v1254, %v1254
        %1257 = vadd.xlane.f32.xlu0 %v1255
        %v1258 = vpop.xlane.xlu0 %1257
        %1259 = vadd.xlane.f32.xlu0 %v1256
        %v1260 = vpop.xlane.xlu0 %1259
        %v1261 = vmul.f32 %v1258, %v501
        %v1262 = vmul.f32 %v1260, %v501
        %v1263 = vadd.f32 %v1261, 1e-12
        %v1264 = vadd.f32 %v1262, 1e-12
        %v1265 = vrsqrt.pop %v1263
        %v1266 = vrsqrt.pop %v1264
        %v1267 = vmul.f32 %v1253, %v1265
        %v1268 = vmul.f32 %v1254, %v1266
        %v1269 = vlaneseq
        %v1270 = vshrl.u32 %v1269, 7
        %v1271 = vsub.s32 4, %v1270
        %v1272 = vrot.slane %v370, %v1271
        %v1273 = vmul.f32 %v1272, %v1267
        %v1274 = vmul.f32 %v1272, %v1268
        %v1275 = vlaneseq
        %v1276 = vshrl.u32 %v1275, 7
        %v1277 = vsub.s32 5, %v1276
        %v1278 = vrot.slane %v370, %v1277
        %v1279 = vadd.f32 %v1273, %v1278
        %v1280 = vadd.f32 %v1274, %v1278
        %1281 = vst [vmem:[%s365] sm:$0xff] %v1279
        %1282 = vst [vmem:[%s365 + $0x8] sm:$0xff] %v1280
        %s1283 = sand.u32 %s172, 1
        %s1284 = scalar_lea.sflag [#allocation4], %s1283
        %s1285 = sand.u32 %s172, 1
        %s1286 = smul.addr %s1285, 16
        %s1287 = scalar_lea.vmem [#allocation13], %s1286
        // Predicated region
        $region69: #{tpu_custom_call.1} parent=43 // pred_check
          %p1288 = pneg %p182
        $region70: #{tpu_custom_call.1} parent=43 // pred_check_branch
          %1290 = sbr.rel (%p1288) target = $region72
        $region71: #{tpu_custom_call.1} parent=43 // pred_region
          %s1291 = smul.u32 2, %s28
          %s1293 = ssub.s32 256, 256
          %1294 = vsyncadd %s1284, %s1293
          %s1295 = smul.addr %s1291, 128
          %s1296 = scalar_lea.hbm %s6, %s1295
          %s1297 = sshll.u32 %s1287, 4
          %s1298 = int_to_ptr.vmem [resolvable:$true] %s1297
          %1303 = dma.vmem_to_hbm [thread:$0]  %s1298, 256, %s1296, %s1284, 128, 128, 8
        $region72: #{tpu_custom_call.1} parent=43 // pred_fallthru
          _
      $region44: #{tpu_custom_call.1} parent=5 // pred_fallthru
        _
      %p1304 = scmp.le.s32.totalorder 2, %s23
      // Predicated region
      $region73: #{tpu_custom_call.1} parent=5 // pred_check
        %p1305 = pneg %p1304
      $region74: #{tpu_custom_call.1} parent=5 // pred_check_branch
        %1307 = sbr.rel (%p1305) target = $region76
      $region75: #{tpu_custom_call.1} parent=5 // pred_region
        %s1308 = ssub.s32 %s23, 2
        // Predicated region
        $region77: #{tpu_custom_call.1} parent=75 // pred_check
          %p1309 = pneg %p188
        $region78: #{tpu_custom_call.1} parent=75 // pred_check_branch
          %1311 = sbr.rel (%p1309) target = $region80
        $region79: #{tpu_custom_call.1} parent=75 // pred_region
          %s1312 = sand.u32 %s173, 1
          %s1313 = scalar_lea.sflag [#allocation4], %s1312
          %s1314 = sand.u32 %s173, 1
          %s1315 = smul.addr %s1314, 16
          %s1316 = scalar_lea.vmem [#allocation13], %s1315
          %1317 = dma.done %s1313, 256
        $region80: #{tpu_custom_call.1} parent=75 // pred_fallthru
          _
      $region76: #{tpu_custom_call.1} parent=5 // pred_fallthru
        _
    $region6: #{tpu_custom_call.1} parent=1 // loop_footer
      %s27 = sadd.s32 1, %s23
    $region7: #{tpu_custom_call.1} parent=1 // loop_footer_branch
      %22 = sbr.rel target = $region3
    $region8: #{tpu_custom_call.1} parent=1 // loop_exit
      _
    %1318 = vsyncpa [#allocation3], 1
    %s1319 = scalar_lea.sflag [#allocation3], 1
    %1320 = vsyncpa %s1319, 1
    %1321 = vsyncpa [#allocation6], 1
    %s1322 = scalar_lea.sflag [#allocation6], 1
    %1323 = vsyncpa %s1322, 1
    %1324 = vsyncpa [#allocation9], 1
    %1325 = vsyncpa [#allocation12], 1
    %1326 = vsyncpa [#allocation4], 1
    %s1327 = scalar_lea.sflag [#allocation4], 1
    %1328 = vsyncpa %s1327, 1

// kernel: tpu_custom_call.1
$region0: #{tpu_custom_call.1}
  #allocation0 [shape = 'u32[]', space=smem, size = 0x4, offset = 0x4, fixed_abs, tag = 'smem constant byte address 0x4 - core index']
  #allocation1 [shape = 'u32[144,128]{1,0:T(1,128)}', space=vmem, size = 0x12000, scoped, tag = 'internal scratch']
  %s0 = inlined_call_operand.hbm [shape: f32[32,128], index: 0, kind: input, shape index: {}]
  %s1 = inlined_call_operand.hbm [shape: bf16[32,128], index: 1, kind: input, shape index: {}]
  %s2 = inlined_call_operand.hbm [shape: bf16[128,128], index: 2, kind: input, shape index: {}]
  %s3 = inlined_call_operand.hbm [shape: bf16[128,512], index: 3, kind: input, shape index: {}]
  %s4 = inlined_call_operand.hbm [shape: bf16[512,128], index: 4, kind: input, shape index: {}]
  %s5 = inlined_call_operand.hbm [shape: f32[8,512], index: 5, kind: input, shape index: {}]
  %s6 = inlined_call_operand.hbm [shape: f32[32,128], index: 6, kind: output, shape index: {}]
  %s7 = sld [smem:[#allocation0]]
  $region81: #{tpu_custom_call.1} parent=0
    _
  %s9 = ssub.s32 1, %s7
  %s10 = scalar_select 0, %s9, %s7
  $region1: #{tpu_custom_call.1} parent=0
    #allocation2 [shape = 'u8[16384]{0}', space=vmem, size = 0x4000, scoped, tag = 'input window, operand 0']
    #allocation3 [shape = 's32[2]{0}', space=sflag, size = 0x8, scoped, tag = 'scoped memory for tpu_custom_call.1']
    #allocation4 [shape = 's32[2]{0}', space=sflag, size = 0x8, scoped, tag = 'scoped memory for tpu_custom_call.1']
    #allocation5 [shape = 'u8[8192]{0}', space=vmem, size = 0x2000, scoped, tag = 'input window, operand 1']
    #allocation6 [shape = 's32[2]{0}', space=sflag, size = 0x8, scoped, tag = 'scoped memory for tpu_custom_call.1']
    #allocation7 [shape = 'u8[32768]{0}', space=vmem, size = 0x8000, scoped, tag = 'input window, operand 2, single buffered']
    #allocation8 [shape = 'u8[131072]{0}', space=vmem, size = 0x20000, scoped, tag = 'input window, operand 3, single buffered']
    #allocation9 [shape = 's32[1]{0}', space=sflag, size = 0x4, scoped, tag = 'scoped memory for tpu_custom_call.1']
    #allocation10 [shape = 'u8[131072]{0}', space=vmem, size = 0x20000, scoped, tag = 'input window, operand 4, single buffered']
    #allocation11 [shape = 'u8[16384]{0}', space=vmem, size = 0x4000, scoped, tag = 'input window, operand 5, single buffered']
    #allocation12 [shape = 's32[1]{0}', space=sflag, size = 0x4, scoped, tag = 'scoped memory for tpu_custom_call.1']
    #allocation13 [shape = 'u8[16384]{0}', space=vmem, size = 0x4000, scoped, tag = 'output window, operand 0']
    %11 = vsyncpa [#allocation3], 0
    %s12 = scalar_lea.sflag [#allocation3], 1
    %13 = vsyncpa %s12, 0
    %14 = vsyncpa [#allocation6], 0
    %s15 = scalar_lea.sflag [#allocation6], 1
    %16 = vsyncpa %s15, 0
    %17 = vsyncpa [#allocation9], 0
    %18 = vsyncpa [#allocation12], 0
    %19 = vsyncpa [#allocation4], 0
    %s20 = scalar_lea.sflag [#allocation4], 1
    %21 = vsyncpa %s20, 0
    loop: start=0, step=1, limit=4
    $region2: #{tpu_custom_call.1} parent=1 // loop_pre_header
      _
    $region3: #{tpu_custom_call.1} parent=1 // loop_header
      %s23 = sphi 0, %s27
      %p24 = scmp.ge.s32.totalorder %s23, 4
      %s33 = sphi 0, %s35
      %s36 = sphi 0, %s33
      %s37 = sphi 0, %s36
      %s53 = sphi 0, %s37
      %s59 = sphi 0, %s61
      %s62 = sphi 0, %s59
      %s63 = sphi 0, %s62
      %s79 = sphi 0, %s63
      %s83 = sphi 0, %s83
      %s85 = sphi 0, %s83
      %s86 = sphi 0, %s85
      %s100 = sphi 0, %s86
      %s104 = sphi 0, %s104
      %s106 = sphi 0, %s104
      %s107 = sphi 0, %s106
      %s121 = sphi 0, %s107
      %s125 = sphi 0, %s125
      %s127 = sphi 0, %s125
      %s128 = sphi 0, %s127
      %s142 = sphi 0, %s128
      %s146 = sphi 0, %s146
      %s148 = sphi 0, %s146
      %s149 = sphi 0, %s148
      %s163 = sphi 0, %s149
      %s169 = sphi 0, %s171
      %s172 = sphi 0, %s169
      %s173 = sphi 0, %s172
      %s189 = sphi 0, %s173
    $region4: #{tpu_custom_call.1} parent=1 // loop_header_branch
      %26 = sbr.rel (%p24) target = $region8
    $region5: #{tpu_custom_call.1} parent=1 // loop_body
      %s28 = ssub.s32 %s23, 1
      %s29 = ssub.s32 %s23, 2
      %s30 = sadd.s32 %s23, 1
      %s31 = ssub.s32 %s23, %s30
      %p32 = scmp.eq.s32.totalorder %s31, 0
      %s34 = sadd.s32 %s33, 1
      %s35 = scalar_select %p32, %s33, %s34
      %p38 = pneg %p32
      %p39 = scmp.eq.s32.totalorder %s23, 1
      %p40 = por %p38, %p39
      %p41 = scmp.ne.s32.totalorder %s33, %s36
      %p42 = scmp.eq.s32.totalorder %s23, 0
      %p43 = por %p41, %p42
      %p44 = scmp.ne.s32.totalorder %s33, %s36
      %p45 = scmp.eq.s32.totalorder %s28, 1
      %p46 = por %p44, %p45
      %p47 = scmp.ne.s32.totalorder %s36, %s37
      %p48 = scmp.eq.s32.totalorder %s28, 0
      %p49 = por %p47, %p48
      %p50 = scmp.ne.s32.totalorder %s36, %s37
      %p51 = scmp.eq.s32.totalorder %s29, 1
      %p52 = por %p50, %p51
      %p54 = scmp.ne.s32.totalorder %s37, %s53
      %p55 = scmp.eq.s32.totalorder %s29, 0
      %p56 = por %p54, %p55
      %s57 = ssub.s32 %s23, %s30
      %p58 = scmp.eq.s32.totalorder %s57, 0
      %s60 = sadd.s32 %s59, 1
      %s61 = scalar_select %p58, %s59, %s60
      %p64 = pneg %p58
      %p65 = scmp.eq.s32.totalorder %s23, 1
      %p66 = por %p64, %p65
      %p67 = scmp.ne.s32.totalorder %s59, %s62
      %p68 = scmp.eq.s32.totalorder %s23, 0
      %p69 = por %p67, %p68
      %p70 = scmp.ne.s32.totalorder %s59, %s62
      %p71 = scmp.eq.s32.totalorder %s28, 1
      %p72 = por %p70, %p71
      %p73 = scmp.ne.s32.totalorder %s62, %s63
      %p74 = scmp.eq.s32.totalorder %s28, 0
      %p75 = por %p73, %p74
      %p76 = scmp.ne.s32.totalorder %s62, %s63
      %p77 = scmp.eq.s32.totalorder %s29, 1
      %p78 = por %p76, %p77
      %p80 = scmp.ne.s32.totalorder %s63, %s79
      %p81 = scmp.eq.s32.totalorder %s29, 0
      %p82 = por %p80, %p81
      %s84 = sadd.s32 %s83, 1
      %p87 = scmp.eq.s32.totalorder %s23, 1
      %p88 = scmp.ne.s32.totalorder %s83, %s85
      %p89 = scmp.eq.s32.totalorder %s23, 0
      %p90 = por %p88, %p89
      %p91 = scmp.ne.s32.totalorder %s83, %s85
      %p92 = scmp.eq.s32.totalorder %s28, 1
      %p93 = por %p91, %p92
      %p94 = scmp.ne.s32.totalorder %s85, %s86
      %p95 = scmp.eq.s32.totalorder %s28, 0
      %p96 = por %p94, %p95
      %p97 = scmp.ne.s32.totalorder %s85, %s86
      %p98 = scmp.eq.s32.totalorder %s29, 1
      %p99 = por %p97, %p98
      %p101 = scmp.ne.s32.totalorder %s86, %s100
      %p102 = scmp.eq.s32.totalorder %s29, 0
      %p103 = por %p101, %p102
      %s105 = sadd.s32 %s104, 1
      %p108 = scmp.eq.s32.totalorder %s23, 1
      %p109 = scmp.ne.s32.totalorder %s104, %s106
      %p110 = scmp.eq.s32.totalorder %s23, 0
      %p111 = por %p109, %p110
      %p112 = scmp.ne.s32.totalorder %s104, %s106
      %p113 = scmp.eq.s32.totalorder %s28, 1
      %p114 = por %p112, %p113
      %p115 = scmp.ne.s32.totalorder %s106, %s107
      %p116 = scmp.eq.s32.totalorder %s28, 0
      %p117 = por %p115, %p116
      %p118 = scmp.ne.s32.totalorder %s106, %s107
      %p119 = scmp.eq.s32.totalorder %s29, 1
      %p120 = por %p118, %p119
      %p122 = scmp.ne.s32.totalorder %s107, %s121
      %p123 = scmp.eq.s32.totalorder %s29, 0
      %p124 = por %p122, %p123
      %s126 = sadd.s32 %s125, 1
      %p129 = scmp.eq.s32.totalorder %s23, 1
      %p130 = scmp.ne.s32.totalorder %s125, %s127
      %p131 = scmp.eq.s32.totalorder %s23, 0
      %p132 = por %p130, %p131
      %p133 = scmp.ne.s32.totalorder %s125, %s127
      %p134 = scmp.eq.s32.totalorder %s28, 1
      %p135 = por %p133, %p134
      %p136 = scmp.ne.s32.totalorder %s127, %s128
      %p137 = scmp.eq.s32.totalorder %s28, 0
      %p138 = por %p136, %p137
      %p139 = scmp.ne.s32.totalorder %s127, %s128
      %p140 = scmp.eq.s32.totalorder %s29, 1
      %p141 = por %p139, %p140
      %p143 = scmp.ne.s32.totalorder %s128, %s142
      %p144 = scmp.eq.s32.totalorder %s29, 0
      %p145 = por %p143, %p144
      %s147 = sadd.s32 %s146, 1
      %p150 = scmp.eq.s32.totalorder %s23, 1
      %p151 = scmp.ne.s32.totalorder %s146, %s148
      %p152 = scmp.eq.s32.totalorder %s23, 0
      %p153 = por %p151, %p152
      %p154 = scmp.ne.s32.totalorder %s146, %s148
      %p155 = scmp.eq.s32.totalorder %s28, 1
      %p156 = por %p154, %p155
      %p157 = scmp.ne.s32.totalorder %s148, %s149
      %p158 = scmp.eq.s32.totalorder %s28, 0
      %p159 = por %p157, %p158
      %p160 = scmp.ne.s32.totalorder %s148, %s149
      %p161 = scmp.eq.s32.totalorder %s29, 1
      %p162 = por %p160, %p161
      %p164 = scmp.ne.s32.totalorder %s149, %s163
      %p165 = scmp.eq.s32.totalorder %s29, 0
      %p166 = por %p164, %p165
      %s167 = ssub.s32 %s23, %s30
      %p168 = scmp.eq.s32.totalorder %s167, 0
      %s170 = sadd.s32 %s169, 1
      %s171 = scalar_select %p168, %s169, %s170
      %p174 = pneg %p168
      %p175 = scmp.eq.s32.totalorder %s23, 1
      %p176 = por %p174, %p175
      %p177 = scmp.ne.s32.totalorder %s169, %s172
      %p178 = scmp.eq.s32.totalorder %s23, 0
      %p179 = por %p177, %p178
      %p180 = scmp.ne.s32.totalorder %s169, %s172
      %p181 = scmp.eq.s32.totalorder %s28, 1
      %p182 = por %p180, %p181
      %p183 = scmp.ne.s32.totalorder %s172, %s173
      %p184 = scmp.eq.s32.totalorder %s28, 0
      %p185 = por %p183, %p184
      %p186 = scmp.ne.s32.totalorder %s172, %s173
      %p187 = scmp.eq.s32.totalorder %s29, 1
      %p188 = por %p186, %p187
      %p190 = scmp.ne.s32.totalorder %s173, %s189
      %p191 = scmp.eq.s32.totalorder %s29, 0
      %p192 = por %p190, %p191
      %p193 = scmp.le.s32.totalorder 1, %s23
      %p194 = scmp.lt.s32.totalorder %s23, 3
      %p195 = pnand %p193, %p194
      %p196 = pneg %p195
      // Predicated region
      $region9: #{tpu_custom_call.1} parent=5 // pred_check
        _
      $region10: #{tpu_custom_call.1} parent=5 // pred_check_branch
        %198 = sbr.rel (%p195) target = $region12
      $region11: #{tpu_custom_call.1} parent=5 // pred_region
        %s199 = ssub.s32 %s23, 1
        // Predicated region
        $region13: #{tpu_custom_call.1} parent=11 // pred_check
          %p200 = pneg %p96
        $region14: #{tpu_custom_call.1} parent=11 // pred_check_branch
          %202 = sbr.rel (%p200) target = $region16
        $region15: #{tpu_custom_call.1} parent=11 // pred_region
          %s204 = ssub.s32 1024, 1024
          %205 = vsyncadd [#allocation6], %s204
          %s206 = sshll.u32 [#allocation7], 4
          %s207 = int_to_ptr.vmem [resolvable:$true] %s206
          %212 = dma.hbm_to_vmem [thread:$0]  %s2, 1024, %s207, [#allocation6], 64, 64, 4
        $region16: #{tpu_custom_call.1} parent=11 // pred_fallthru
          _
        // Predicated region
        $region17: #{tpu_custom_call.1} parent=11 // pred_check
          %p213 = pneg %p117
        $region18: #{tpu_custom_call.1} parent=11 // pred_check_branch
          %215 = sbr.rel (%p213) target = $region20
        $region19: #{tpu_custom_call.1} parent=11 // pred_region
          %s217 = ssub.s32 4096, 4096
          %218 = vsyncadd [#allocation9], %s217
          %s219 = sshll.u32 [#allocation8], 4
          %s220 = int_to_ptr.vmem [resolvable:$true] %s219
          %225 = dma.hbm_to_vmem [thread:$0]  %s3, 4096, %s220, [#allocation9], 256, 256, 16
        $region20: #{tpu_custom_call.1} parent=11 // pred_fallthru
          _
        // Predicated region
        $region21: #{tpu_custom_call.1} parent=11 // pred_check
          %p226 = pneg %p138
        $region22: #{tpu_custom_call.1} parent=11 // pred_check_branch
          %228 = sbr.rel (%p226) target = $region24
        $region23: #{tpu_custom_call.1} parent=11 // pred_region
          %s230 = ssub.s32 4096, 4096
          %231 = vsyncadd [#allocation9], %s230
          %s232 = sshll.u32 [#allocation10], 4
          %s233 = int_to_ptr.vmem [resolvable:$true] %s232
          %238 = dma.hbm_to_vmem [thread:$0]  %s4, 4096, %s233, [#allocation9], 64, 64, 4
        $region24: #{tpu_custom_call.1} parent=11 // pred_fallthru
          _
        // Predicated region
        $region25: #{tpu_custom_call.1} parent=11 // pred_check
          %p239 = pneg %p159
        $region26: #{tpu_custom_call.1} parent=11 // pred_check_branch
          %241 = sbr.rel (%p239) target = $region28
        $region27: #{tpu_custom_call.1} parent=11 // pred_region
          %s243 = ssub.s32 512, 512
          %244 = vsyncadd [#allocation12], %s243
          %s246 = sshll.u32 [#allocation11], 4
          %s247 = int_to_ptr.vmem [resolvable:$true] %s246
          %249 = dma.hbm_to_vmem [thread:$0]  %s5, 512, %s247, [#allocation12]
        $region28: #{tpu_custom_call.1} parent=11 // pred_fallthru
          _
      $region12: #{tpu_custom_call.1} parent=5 // pred_fallthru
        _
      %p250 = scmp.lt.s32.totalorder %s23, 2
      // Predicated region
      $region29: #{tpu_custom_call.1} parent=5 // pred_check
        %p251 = pneg %p250
      $region30: #{tpu_custom_call.1} parent=5 // pred_check_branch
        %253 = sbr.rel (%p251) target = $region32
      $region31: #{tpu_custom_call.1} parent=5 // pred_region
        // Predicated region
        $region33: #{tpu_custom_call.1} parent=31 // pred_check
          %p254 = pneg %p43
        $region34: #{tpu_custom_call.1} parent=31 // pred_check_branch
          %256 = sbr.rel (%p254) target = $region36
        $region35: #{tpu_custom_call.1} parent=31 // pred_region
          %s257 = sand.u32 %s33, 1
          %s258 = scalar_lea.sflag [#allocation3], %s257
          %s259 = sand.u32 %s33, 1
          %s260 = smul.addr %s259, 16
          %s261 = scalar_lea.vmem [#allocation2], %s260
          %s262 = smul.u32 2, %s23
          %s264 = ssub.s32 256, 256
          %265 = vsyncadd %s258, %s264
          %s266 = smul.addr %s262, 128
          %s267 = scalar_lea.hbm %s0, %s266
          %s268 = sshll.u32 %s261, 4
          %s269 = int_to_ptr.vmem [resolvable:$true] %s268
          %274 = dma.hbm_to_vmem [thread:$0]  %s267, 256, %s269, %s258, 128, 128, 8
        $region36: #{tpu_custom_call.1} parent=31 // pred_fallthru
          _
        // Predicated region
        $region37: #{tpu_custom_call.1} parent=31 // pred_check
          %p275 = pneg %p69
        $region38: #{tpu_custom_call.1} parent=31 // pred_check_branch
          %277 = sbr.rel (%p275) target = $region40
        $region39: #{tpu_custom_call.1} parent=31 // pred_region
          %s278 = sand.u32 %s23, 1
          %s279 = scalar_lea.sflag [#allocation6], %s278
          %s280 = sand.u32 %s59, 1
          %s281 = smul.addr %s280, 8
          %s282 = scalar_lea.vmem [#allocation5], %s281
          %s283 = smul.u32 2, %s23
          %s285 = ssub.s32 128, 128
          %286 = vsyncadd %s279, %s285
          %s287 = smul.addr %s283, 64
          %s288 = scalar_lea.hbm %s1, %s287
          %s289 = sshll.u32 %s282, 4
          %s290 = int_to_ptr.vmem [resolvable:$true] %s289
          %295 = dma.hbm_to_vmem [thread:$0]  %s288, 128, %s290, %s279, 64, 64, 4
        $region40: #{tpu_custom_call.1} parent=31 // pred_fallthru
          _
      $region32: #{tpu_custom_call.1} parent=5 // pred_fallthru
        _
      %p296 = scmp.le.s32.totalorder 1, %s23
      %p297 = scmp.lt.s32.totalorder %s23, 3
      %p298 = pnand %p296, %p297
      %p299 = pneg %p298
      // Predicated region
      $region41: #{tpu_custom_call.1} parent=5 // pred_check
        _
      $region42: #{tpu_custom_call.1} parent=5 // pred_check_branch
        %301 = sbr.rel (%p298) target = $region44
      $region43: #{tpu_custom_call.1} parent=5 // pred_region
        %s302 = ssub.s32 %s23, 1
        %s303 = sand.u32 %s36, 1
        %s304 = scalar_lea.sflag [#allocation3], %s303
        %s305 = sand.u32 %s36, 1
        %s306 = smul.addr %s305, 16
        %s307 = scalar_lea.vmem [#allocation2], %s306
        // Predicated region
        $region45: #{tpu_custom_call.1} parent=43 // pred_check
          %p308 = pneg %p49
        $region46: #{tpu_custom_call.1} parent=43 // pred_check_branch
          %310 = sbr.rel (%p308) target = $region48
        $region47: #{tpu_custom_call.1} parent=43 // pred_region
          %311 = dma.done %s304, 256
        $region48: #{tpu_custom_call.1} parent=43 // pred_fallthru
          _
        %s312 = sand.u32 %s28, 1
        %s313 = scalar_lea.sflag [#allocation6], %s312
        %s314 = sand.u32 %s62, 1
        %s315 = smul.addr %s314, 8
        %s316 = scalar_lea.vmem [#allocation5], %s315
        // Predicated region
        $region49: #{tpu_custom_call.1} parent=43 // pred_check
          %p317 = pneg %p75
        $region50: #{tpu_custom_call.1} parent=43 // pred_check_branch
          %319 = sbr.rel (%p317) target = $region52
        $region51: #{tpu_custom_call.1} parent=43 // pred_region
          %320 = dma.done %s313, 128
        $region52: #{tpu_custom_call.1} parent=43 // pred_fallthru
          _
        // Predicated region
        $region53: #{tpu_custom_call.1} parent=43 // pred_check
          %p321 = pneg %p96
        $region54: #{tpu_custom_call.1} parent=43 // pred_check_branch
          %323 = sbr.rel (%p321) target = $region56
        $region55: #{tpu_custom_call.1} parent=43 // pred_region
          %324 = dma.done [#allocation6], 1024
        $region56: #{tpu_custom_call.1} parent=43 // pred_fallthru
          _
        // Predicated region
        $region57: #{tpu_custom_call.1} parent=43 // pred_check
          %p325 = pneg %p117
        $region58: #{tpu_custom_call.1} parent=43 // pred_check_branch
          %327 = sbr.rel (%p325) target = $region60
        $region59: #{tpu_custom_call.1} parent=43 // pred_region
          %328 = dma.done [#allocation9], 4096
        $region60: #{tpu_custom_call.1} parent=43 // pred_fallthru
          _
        // Predicated region
        $region61: #{tpu_custom_call.1} parent=43 // pred_check
          %p329 = pneg %p138
        $region62: #{tpu_custom_call.1} parent=43 // pred_check_branch
          %331 = sbr.rel (%p329) target = $region64
        $region63: #{tpu_custom_call.1} parent=43 // pred_region
          %332 = dma.done [#allocation9], 4096
        $region64: #{tpu_custom_call.1} parent=43 // pred_fallthru
          _
        // Predicated region
        $region65: #{tpu_custom_call.1} parent=43 // pred_check
          %p333 = pneg %p159
        $region66: #{tpu_custom_call.1} parent=43 // pred_check_branch
          %335 = sbr.rel (%p333) target = $region68
        $region67: #{tpu_custom_call.1} parent=43 // pred_region
          %336 = dma.done [#allocation12], 512
        $region68: #{tpu_custom_call.1} parent=43 // pred_fallthru
          _
        %s337 = sand.u32 %s36, 1
        %s338 = scalar_lea.sflag [#allocation3], %s337
        %s339 = sand.u32 %s36, 1
        %s340 = smul.addr %s339, 16
        %s341 = scalar_lea.vmem [#allocation2], %s340
        %p342 = pneg %p49
        %p343 = pneg %p46
        %s344 = sand.u32 %s28, 1
        %s345 = scalar_lea.sflag [#allocation6], %s344
        %s346 = sand.u32 %s62, 1
        %s347 = smul.addr %s346, 8
        %s348 = scalar_lea.vmem [#allocation5], %s347
        %p349 = pneg %p75
        %p350 = pneg %p72
        %p351 = pneg %p96
        %p352 = pneg %p93
        %p353 = pneg %p117
        %p354 = pneg %p114
        %p355 = pneg %p138
        %p356 = pneg %p135
        %p357 = pneg %p159
        %p358 = pneg %p156
        %p359 = pneg %p185
        %p360 = pneg %p182
        %s361 = sand.u32 %s172, 1
        %s362 = scalar_lea.sflag [#allocation4], %s361
        %s363 = sand.u32 %s172, 1
        %s364 = smul.addr %s363, 16
        %s365 = scalar_lea.vmem [#allocation13], %s364
        %s366 = smul.u32 2, %s28
        %s367 = smul.u32 2, %s28
        %s368 = smul.u32 2, %s28
        %v370 = vld [vmem:[#allocation11] sm:$0xff]
        %v371 = vld [vmem:[#allocation11 + $0x8] sm:$0xff]
        %v372 = vld [vmem:[#allocation11 + $0x10] sm:$0xff]
        %v373 = vld [vmem:[#allocation11 + $0x18] sm:$0xff]
        %v374 = vld [vmem:[%s307] sm:$0xff]
        %v375 = vld [vmem:[%s307 + $0x8] sm:$0xff]
        %v376 = vld [vmem:[%s316] sm:$0xf]
        %v377 = vld [vmem:[%s316 + $0x4] sm:$0xf]
        %v378 = vld [vmem:[#allocation7] sm:$0xf]
        %v379 = vld [vmem:[#allocation7 + $0x4] sm:$0xf]
        %v380 = vld [vmem:[#allocation7 + $0x8] sm:$0xf]
        %v381 = vld [vmem:[#allocation7 + $0xc] sm:$0xf]
        %v382 = vld [vmem:[#allocation7 + $0x10] sm:$0xf]
        %v383 = vld [vmem:[#allocation7 + $0x14] sm:$0xf]
        %v384 = vld [vmem:[#allocation7 + $0x18] sm:$0xf]
        %v385 = vld [vmem:[#allocation7 + $0x1c] sm:$0xf]
        %v386 = vld [vmem:[#allocation7 + $0x20] sm:$0xf]
        %v387 = vld [vmem:[#allocation7 + $0x24] sm:$0xf]
        %v388 = vld [vmem:[#allocation7 + $0x28] sm:$0xf]
        %v389 = vld [vmem:[#allocation7 + $0x2c] sm:$0xf]
        %v390 = vld [vmem:[#allocation7 + $0x30] sm:$0xf]
        %v391 = vld [vmem:[#allocation7 + $0x34] sm:$0xf]
        %v392 = vld [vmem:[#allocation7 + $0x38] sm:$0xf]
        %v393 = vld [vmem:[#allocation7 + $0x3c] sm:$0xf]
        %v396 = vunpack.c.l.b16 %v376
        %v397 = vunpack.c.l.b16 %v377
        %v398 = vpack.c.b16 %v397, %v396
        %v416 = vunpack.c.l.b16 %v378
        %v417 = vunpack.c.l.b16 %v379
        %v418 = vunpack.c.l.b16 %v380
        %v419 = vunpack.c.l.b16 %v381
        %v420 = vunpack.c.l.b16 %v382
        %v421 = vunpack.c.l.b16 %v383
        %v422 = vunpack.c.l.b16 %v384
        %v423 = vunpack.c.l.b16 %v385
        %v424 = vunpack.c.l.b16 %v386
        %v425 = vunpack.c.l.b16 %v387
        %v426 = vunpack.c.l.b16 %v388
        %v427 = vunpack.c.l.b16 %v389
        %v428 = vunpack.c.l.b16 %v390
        %v429 = vunpack.c.l.b16 %v391
        %v430 = vunpack.c.l.b16 %v392
        %v431 = vunpack.c.l.b16 %v393
        %v432 = vpack.c.b16 %v417, %v416
        %v433 = vpack.c.b16 %v419, %v418
        %v434 = vpack.c.b16 %v421, %v420
        %v435 = vpack.c.b16 %v423, %v422
        %v436 = vpack.c.b16 %v425, %v424
        %v437 = vpack.c.b16 %v427, %v426
        %v438 = vpack.c.b16 %v429, %v428
        %v439 = vpack.c.b16 %v431, %v430
        %448 = vmatprep.subr.bf16.mxu0 0
        %449 = vmatpush1.bf16.msra.mxu0 %v439
        %450 = vmatprep.subr.bf16.mxu0 0
        %451 = vmatpush1.bf16.msra.mxu0 %v438
        %452 = vmatprep.subr.bf16.mxu0 0
        %453 = vmatpush1.bf16.msra.mxu0 %v437
        %454 = vmatprep.subr.bf16.mxu0 0
        %455 = vmatpush1.bf16.msra.mxu0 %v436
        %456 = vmatprep.subr.bf16.mxu0 0
        %457 = vmatpush1.bf16.msra.mxu0 %v435
        %458 = vmatprep.subr.bf16.mxu0 0
        %459 = vmatpush1.bf16.msra.mxu0 %v434
        %460 = vmatprep.subr.bf16.mxu0 0
        %461 = vmatpush1.bf16.msra.mxu0 %v433
        %462 = vmatprep.subr.bf16.mxu0 0
        %463 = vmatpush1.bf16.msra.mxu0 %v432
        %464 = vmatprep.subr.bf16.mxu0 0
        %465 = vmatpush2.bf16.msra.mxu0 0
        %466 = vmatprep.subr.bf16.mxu0 0
        %467 = vmatpush2.bf16.msra.mxu0 0
        %468 = vmatprep.subr.bf16.mxu0 0
        %469 = vmatpush2.bf16.msra.mxu0 0
        %470 = vmatprep.subr.bf16.mxu0 0
        %471 = vmatpush2.bf16.msra.mxu0 0
        %472 = vmatprep.subr.bf16.mxu0 0
        %473 = vmatpush2.bf16.msra.mxu0 0
        %474 = vmatprep.subr.bf16.mxu0 0
        %475 = vmatpush2.bf16.msra.mxu0 0
        %476 = vmatprep.subr.bf16.mxu0 0
        %477 = vmatpush2.bf16.msra.mxu0 0
        %478 = vmatprep.subr.bf16.mxu0 0
        %479 = vmatpush2.bf16.msra.mxu0 0
        %480 = vmatprep.mubr.bf16.mxu0 0
        %481 = vmatmul.mubr.bf16.gmra.mxu0 %v398
        %v482 = vpop.f32.mrf.mxu0
        %v483 = vadd.f32 0.0, %v482
        %v484 = vpop.f32.mrf.mxu0
        %v485 = vpop.f32.mrf.mxu0
        %v486 = vadd.f32 0.0, %v485
        %v487 = vpop.f32.mrf.mxu0
        %488 = vdwg.mxu0
        %v489 = vadd.f32 %v374, %v483
        %v490 = vadd.f32 %v375, %v486
        %v491 = vlaneseq
        %v492 = vshrl.u32 %v491, 7
        %v493 = vsub.s32 0, %v492
        %v494 = vrot.slane %v370, %v493
        %v495 = vadd.f32 %v489, %v494
        %v496 = vadd.f32 %v490, %v494
        %497 = vadd.xlane.f32.xlu0 %v495
        %v498 = vpop.xlane.xlu0 %497
        %499 = vadd.xlane.f32.xlu0 %v496
        %v500 = vpop.xlane.xlu0 %499
        %v501 = vrcp.pop 128.0
        %v502 = vmul.f32 %v498, %v501
        %v503 = vmul.f32 %v500, %v501
        %v504 = vsub.f32 %v495, %v502
        %v505 = vsub.f32 %v496, %v503
        %v506 = vmul.f32 %v504, %v504
        %v507 = vmul.f32 %v505, %v505
        %508 = vadd.xlane.f32.xlu0 %v506
        %v509 = vpop.xlane.xlu0 %508
        %510 = vadd.xlane.f32.xlu0 %v507
        %v511 = vpop.xlane.xlu0 %510
        %v512 = vmul.f32 %v509, %v501
        %v513 = vmul.f32 %v511, %v501
        %v514 = vadd.f32 %v512, 1e-12
        %v515 = vadd.f32 %v513, 1e-12
        %v516 = vrsqrt.pop %v514
        %v517 = vrsqrt.pop %v515
        %v518 = vmul.f32 %v504, %v516
        %v519 = vmul.f32 %v505, %v517
        %v520 = vlaneseq
        %v521 = vshrl.u32 %v520, 7
        %v522 = vsub.s32 1, %v521
        %v523 = vrot.slane %v370, %v522
        %v524 = vmul.f32 %v523, %v518
        %v525 = vmul.f32 %v523, %v519
        %v526 = vlaneseq
        %v527 = vshrl.u32 %v526, 7
        %v528 = vsub.s32 2, %v527
        %v529 = vrot.slane %v370, %v528
        %v530 = vadd.f32 %v524, %v529
        %v531 = vadd.f32 %v525, %v529
        %v532 = vpack.c.bf16 %v531, %v530
        %v533 = vld [vmem:[#allocation8] sm:$0xff]
        %v534 = vld [vmem:[#allocation8 + $0x8] sm:$0xff]
        %v535 = vld [vmem:[#allocation8 + $0x10] sm:$0xff]
        %v536 = vld [vmem:[#allocation8 + $0x18] sm:$0xff]
        %v537 = vld [vmem:[#allocation8 + $0x20] sm:$0xff]
        %v538 = vld [vmem:[#allocation8 + $0x28] sm:$0xff]
        %v539 = vld [vmem:[#allocation8 + $0x30] sm:$0xff]
        %v540 = vld [vmem:[#allocation8 + $0x38] sm:$0xff]
        %v541 = vld [vmem:[#allocation8 + $0x40] sm:$0xff]
        %v542 = vld [vmem:[#allocation8 + $0x48] sm:$0xff]
        %v543 = vld [vmem:[#allocation8 + $0x50] sm:$0xff]
        %v544 = vld [vmem:[#allocation8 + $0x58] sm:$0xff]
        %v545 = vld [vmem:[#allocation8 + $0x60] sm:$0xff]
        %v546 = vld [vmem:[#allocation8 + $0x68] sm:$0xff]
        %v547 = vld [vmem:[#allocation8 + $0x70] sm:$0xff]
        %v548 = vld [vmem:[#allocation8 + $0x78] sm:$0xff]
        %v549 = vld [vmem:[#allocation8 + $0x80] sm:$0xff]
        %v550 = vld [vmem:[#allocation8 + $0x88] sm:$0xff]
        %v551 = vld [vmem:[#allocation8 + $0x90] sm:$0xff]
        %v552 = vld [vmem:[#allocation8 + $0x98] sm:$0xff]
        %v553 = vld [vmem:[#allocation8 + $0xa0] sm:$0xff]
        %v554 = vld [vmem:[#allocation8 + $0xa8] sm:$0xff]
        %v555 = vld [vmem:[#allocation8 + $0xb0] sm:$0xff]
        %v556 = vld [vmem:[#allocation8 + $0xb8] sm:$0xff]
        %v557 = vld [vmem:[#allocation8 + $0xc0] sm:$0xff]
        %v558 = vld [vmem:[#allocation8 + $0xc8] sm:$0xff]
        %v559 = vld [vmem:[#allocation8 + $0xd0] sm:$0xff]
        %v560 = vld [vmem:[#allocation8 + $0xd8] sm:$0xff]
        %v561 = vld [vmem:[#allocation8 + $0xe0] sm:$0xff]
        %v562 = vld [vmem:[#allocation8 + $0xe8] sm:$0xff]
        %v563 = vld [vmem:[#allocation8 + $0xf0] sm:$0xff]
        %v564 = vld [vmem:[#allocation8 + $0xf8] sm:$0xff]
        %v565 = vlaneseq
        %v566 = vshrl.u32 %v565, 7
        %v567 = vsub.s32 6, %v566
        %v568 = vrot.slane %v370, %v567
        %v569 = vlaneseq
        %v570 = vshrl.u32 %v569, 7
        %v571 = vsub.s32 6, %v570
        %v572 = vrot.slane %v371, %v571
        %v573 = vlaneseq
        %v574 = vshrl.u32 %v573, 7
        %v575 = vsub.s32 6, %v574
        %v576 = vrot.slane %v372, %v575
        %v577 = vlaneseq
        %v578 = vshrl.u32 %v577, 7
        %v579 = vsub.s32 6, %v578
        %v580 = vrot.slane %v373, %v579
        %v613 = vunpack.c.l.b16 %v533
        %v614 = vunpack.c.h.b16 %v533
        %v615 = vunpack.c.l.b16 %v534
        %v616 = vunpack.c.h.b16 %v534
        %v617 = vunpack.c.l.b16 %v535
        %v618 = vunpack.c.h.b16 %v535
        %v619 = vunpack.c.l.b16 %v536
        %v620 = vunpack.c.h.b16 %v536
        %v621 = vunpack.c.l.b16 %v537
        %v622 = vunpack.c.h.b16 %v537
        %v623 = vunpack.c.l.b16 %v538
        %v624 = vunpack.c.h.b16 %v538
        %v625 = vunpack.c.l.b16 %v539
        %v626 = vunpack.c.h.b16 %v539
        %v627 = vunpack.c.l.b16 %v540
        %v628 = vunpack.c.h.b16 %v540
        %v629 = vunpack.c.l.b16 %v541
        %v630 = vunpack.c.h.b16 %v541
        %v631 = vunpack.c.l.b16 %v542
        %v632 = vunpack.c.h.b16 %v542
        %v633 = vunpack.c.l.b16 %v543
        %v634 = vunpack.c.h.b16 %v543
        %v635 = vunpack.c.l.b16 %v544
        %v636 = vunpack.c.h.b16 %v544
        %v637 = vunpack.c.l.b16 %v545
        %v638 = vunpack.c.h.b16 %v545
        %v639 = vunpack.c.l.b16 %v546
        %v640 = vunpack.c.h.b16 %v546
        %v641 = vunpack.c.l.b16 %v547
        %v642 = vunpack.c.h.b16 %v547
        %v643 = vunpack.c.l.b16 %v548
        %v644 = vunpack.c.h.b16 %v548
        %v645 = vunpack.c.l.b16 %v549
        %v646 = vunpack.c.h.b16 %v549
        %v647 = vunpack.c.l.b16 %v550
        %v648 = vunpack.c.h.b16 %v550
        %v649 = vunpack.c.l.b16 %v551
        %v650 = vunpack.c.h.b16 %v551
        %v651 = vunpack.c.l.b16 %v552
        %v652 = vunpack.c.h.b16 %v552
        %v653 = vunpack.c.l.b16 %v553
        %v654 = vunpack.c.h.b16 %v553
        %v655 = vunpack.c.l.b16 %v554
        %v656 = vunpack.c.h.b16 %v554
        %v657 = vunpack.c.l.b16 %v555
        %v658 = vunpack.c.h.b16 %v555
        %v659 = vunpack.c.l.b16 %v556
        %v660 = vunpack.c.h.b16 %v556
        %v661 = vunpack.c.l.b16 %v557
        %v662 = vunpack.c.h.b16 %v557
        %v663 = vunpack.c.l.b16 %v558
        %v664 = vunpack.c.h.b16 %v558
        %v665 = vunpack.c.l.b16 %v559
        %v666 = vunpack.c.h.b16 %v559
        %v667 = vunpack.c.l.b16 %v560
        %v668 = vunpack.c.h.b16 %v560
        %v669 = vunpack.c.l.b16 %v561
        %v670 = vunpack.c.h.b16 %v561
        %v671 = vunpack.c.l.b16 %v562
        %v672 = vunpack.c.h.b16 %v562
        %v673 = vunpack.c.l.b16 %v563
        %v674 = vunpack.c.h.b16 %v563
        %v675 = vunpack.c.l.b16 %v564
        %v676 = vunpack.c.h.b16 %v564
        %v677 = vpack.c.b16 %v617, %v613
        %v678 = vpack.c.b16 %v618, %v614
        %v679 = vpack.c.b16 %v619, %v615
        %v680 = vpack.c.b16 %v620, %v616
        %v681 = vpack.c.b16 %v625, %v621
        %v682 = vpack.c.b16 %v626, %v622
        %v683 = vpack.c.b16 %v627, %v623
        %v684 = vpack.c.b16 %v628, %v624
        %v685 = vpack.c.b16 %v633, %v629
        %v686 = vpack.c.b16 %v634, %v630
        %v687 = vpack.c.b16 %v635, %v631
        %v688 = vpack.c.b16 %v636, %v632
        %v689 = vpack.c.b16 %v641, %v637
        %v690 = vpack.c.b16 %v642, %v638
        %v691 = vpack.c.b16 %v643, %v639
        %v692 = vpack.c.b16 %v644, %v640
        %v693 = vpack.c.b16 %v649, %v645
        %v694 = vpack.c.b16 %v650, %v646
        %v695 = vpack.c.b16 %v651, %v647
        %v696 = vpack.c.b16 %v652, %v648
        %v697 = vpack.c.b16 %v657, %v653
        %v698 = vpack.c.b16 %v658, %v654
        %v699 = vpack.c.b16 %v659, %v655
        %v700 = vpack.c.b16 %v660, %v656
        %v701 = vpack.c.b16 %v665, %v661
        %v702 = vpack.c.b16 %v666, %v662
        %v703 = vpack.c.b16 %v667, %v663
        %v704 = vpack.c.b16 %v668, %v664
        %v705 = vpack.c.b16 %v673, %v669
        %v706 = vpack.c.b16 %v674, %v670
        %v707 = vpack.c.b16 %v675, %v671
        %v708 = vpack.c.b16 %v676, %v672
        %741 = vmatprep.subr.bf16.mxu0 %v706
        %742 = vmatpush1.bf16.msra.mxu0 %v705
        %743 = vmatprep.subr.bf16.mxu0 %v702
        %744 = vmatpush1.bf16.msra.mxu0 %v701
        %745 = vmatprep.subr.bf16.mxu0 %v698
        %746 = vmatpush1.bf16.msra.mxu0 %v697
        %747 = vmatprep.subr.bf16.mxu0 %v694
        %748 = vmatpush1.bf16.msra.mxu0 %v693
        %749 = vmatprep.subr.bf16.mxu0 %v690
        %750 = vmatpush1.bf16.msra.mxu0 %v689
        %751 = vmatprep.subr.bf16.mxu0 %v686
        %752 = vmatpush1.bf16.msra.mxu0 %v685
        %753 = vmatprep.subr.bf16.mxu0 %v682
        %754 = vmatpush1.bf16.msra.mxu0 %v681
        %755 = vmatprep.subr.bf16.mxu0 %v678
        %756 = vmatpush1.bf16.msra.mxu0 %v677
        %757 = vmatprep.subr.bf16.mxu0 0
        %758 = vmatpush2.bf16.msra.mxu0 0
        %759 = vmatprep.subr.bf16.mxu0 0
        %760 = vmatpush2.bf16.msra.mxu0 0
        %761 = vmatprep.subr.bf16.mxu0 0
        %762 = vmatpush2.bf16.msra.mxu0 0
        %763 = vmatprep.subr.bf16.mxu0 0
        %764 = vmatpush2.bf16.msra.mxu0 0
        %765 = vmatprep.subr.bf16.mxu0 0
        %766 = vmatpush2.bf16.msra.mxu0 0
        %767 = vmatprep.subr.bf16.mxu0 0
        %768 = vmatpush2.bf16.msra.mxu0 0
        %769 = vmatprep.subr.bf16.mxu0 0
        %770 = vmatpush2.bf16.msra.mxu0 0
        %771 = vmatprep.subr.bf16.mxu0 0
        %772 = vmatpush2.bf16.msra.mxu0 0
        %773 = vmatprep.mubr.bf16.mxu0 0
        %774 = vmatmul.mubr.bf16.gmra.mxu0 %v532
        %v775 = vpop.f32.mrf.mxu0
        %v776 = vadd.f32 %v568, %v775
        %v777 = vpop.f32.mrf.mxu0
        %v778 = vadd.f32 %v572, %v777
        %v779 = vpop.f32.mrf.mxu0
        %v780 = vadd.f32 %v568, %v779
        %v781 = vpop.f32.mrf.mxu0
        %v782 = vadd.f32 %v572, %v781
        %783 = vdwg.mxu0
        %784 = vmatprep.subr.bf16.mxu0 %v708
        %785 = vmatpush1.bf16.msra.mxu0 %v707
        %786 = vmatprep.subr.bf16.mxu0 %v704
        %787 = vmatpush1.bf16.msra.mxu0 %v703
        %788 = vmatprep.subr.bf16.mxu0 %v700
        %789 = vmatpush1.bf16.msra.mxu0 %v699
        %790 = vmatprep.subr.bf16.mxu0 %v696
        %791 = vmatpush1.bf16.msra.mxu0 %v695
        %792 = vmatprep.subr.bf16.mxu0 %v692
        %793 = vmatpush1.bf16.msra.mxu0 %v691
        %794 = vmatprep.subr.bf16.mxu0 %v688
        %795 = vmatpush1.bf16.msra.mxu0 %v687
        %796 = vmatprep.subr.bf16.mxu0 %v684
        %797 = vmatpush1.bf16.msra.mxu0 %v683
        %798 = vmatprep.subr.bf16.mxu0 %v680
        %799 = vmatpush1.bf16.msra.mxu0 %v679
        %800 = vmatprep.subr.bf16.mxu0 0
        %801 = vmatpush2.bf16.msra.mxu0 0
        %802 = vmatprep.subr.bf16.mxu0 0
        %803 = vmatpush2.bf16.msra.mxu0 0
        %804 = vmatprep.subr.bf16.mxu0 0
        %805 = vmatpush2.bf16.msra.mxu0 0
        %806 = vmatprep.subr.bf16.mxu0 0
        %807 = vmatpush2.bf16.msra.mxu0 0
        %808 = vmatprep.subr.bf16.mxu0 0
        %809 = vmatpush2.bf16.msra.mxu0 0
        %810 = vmatprep.subr.bf16.mxu0 0
        %811 = vmatpush2.bf16.msra.mxu0 0
        %812 = vmatprep.subr.bf16.mxu0 0
        %813 = vmatpush2.bf16.msra.mxu0 0
        %814 = vmatprep.subr.bf16.mxu0 0
        %815 = vmatpush2.bf16.msra.mxu0 0
        %816 = vmatprep.mubr.bf16.mxu0 0
        %817 = vmatmul.mubr.bf16.gmra.mxu0 %v532
        %v818 = vpop.f32.mrf.mxu0
        %v819 = vadd.f32 %v576, %v818
        %v820 = vpop.f32.mrf.mxu0
        %v821 = vadd.f32 %v580, %v820
        %v822 = vpop.f32.mrf.mxu0
        %v823 = vadd.f32 %v576, %v822
        %v824 = vpop.f32.mrf.mxu0
        %v825 = vadd.f32 %v580, %v824
        %826 = vdwg.mxu0
        %v827 = vmul.f32 %v776, 0.5
        %v828 = vmul.f32 %v778, 0.5
        %v829 = vmul.f32 %v819, 0.5
        %v830 = vmul.f32 %v821, 0.5
        %v831 = vmul.f32 %v780, 0.5
        %v832 = vmul.f32 %v782, 0.5
        %v833 = vmul.f32 %v823, 0.5
        %v834 = vmul.f32 %v825, 0.5
        %v835 = vmul.f32 %v776, 0.044715
        %v836 = vmul.f32 %v778, 0.044715
        %v837 = vmul.f32 %v819, 0.044715
        %v838 = vmul.f32 %v821, 0.044715
        %v839 = vmul.f32 %v780, 0.044715
        %v840 = vmul.f32 %v782, 0.044715
        %v841 = vmul.f32 %v823, 0.044715
        %v842 = vmul.f32 %v825, 0.044715
        %v843 = vmul.f32 %v835, %v776
        %v844 = vmul.f32 %v836, %v778
        %v845 = vmul.f32 %v837, %v819
        %v846 = vmul.f32 %v838, %v821
        %v847 = vmul.f32 %v839, %v780
        %v848 = vmul.f32 %v840, %v782
        %v849 = vmul.f32 %v841, %v823
        %v850 = vmul.f32 %v842, %v825
        %v851 = vmul.f32 %v843, %v776
        %v852 = vmul.f32 %v844, %v778
        %v853 = vmul.f32 %v845, %v819
        %v854 = vmul.f32 %v846, %v821
        %v855 = vmul.f32 %v847, %v780
        %v856 = vmul.f32 %v848, %v782
        %v857 = vmul.f32 %v849, %v823
        %v858 = vmul.f32 %v850, %v825
        %v859 = vadd.f32 %v776, %v851
        %v860 = vadd.f32 %v778, %v852
        %v861 = vadd.f32 %v819, %v853
        %v862 = vadd.f32 %v821, %v854
        %v863 = vadd.f32 %v780, %v855
        %v864 = vadd.f32 %v782, %v856
        %v865 = vadd.f32 %v823, %v857
        %v866 = vadd.f32 %v825, %v858
        %v867 = vmul.f32 %v859, 0.7978846
        %v868 = vmul.f32 %v860, 0.7978846
        %v869 = vmul.f32 %v861, 0.7978846
        %v870 = vmul.f32 %v862, 0.7978846
        %v871 = vmul.f32 %v863, 0.7978846
        %v872 = vmul.f32 %v864, 0.7978846
        %v873 = vmul.f32 %v865, 0.7978846
        %v874 = vmul.f32 %v866, 0.7978846
        %v875 = vtanh.pop %v867
        %v876 = vtanh.pop %v868
        %v877 = vtanh.pop %v869
        %v878 = vtanh.pop %v870
        %v879 = vtanh.pop %v871
        %v880 = vtanh.pop %v872
        %v881 = vtanh.pop %v873
        %v882 = vtanh.pop %v874
        %v883 = vadd.f32 %v875, 1.0
        %v884 = vadd.f32 %v876, 1.0
        %v885 = vadd.f32 %v877, 1.0
        %v886 = vadd.f32 %v878, 1.0
        %v887 = vadd.f32 %v879, 1.0
        %v888 = vadd.f32 %v880, 1.0
        %v889 = vadd.f32 %v881, 1.0
        %v890 = vadd.f32 %v882, 1.0
        %v891 = vmul.f32 %v827, %v883
        %v892 = vmul.f32 %v828, %v884
        %v893 = vmul.f32 %v829, %v885
        %v894 = vmul.f32 %v830, %v886
        %v895 = vmul.f32 %v831, %v887
        %v896 = vmul.f32 %v832, %v888
        %v897 = vmul.f32 %v833, %v889
        %v898 = vmul.f32 %v834, %v890
        %v899 = vpack.c.bf16 %v895, %v891
        %v900 = vpack.c.bf16 %v896, %v892
        %v901 = vpack.c.bf16 %v897, %v893
        %v902 = vpack.c.bf16 %v898, %v894
        %v903 = vld [vmem:[#allocation10] sm:$0xf]
        %v904 = vld [vmem:[#allocation10 + $0x4] sm:$0xf]
        %v905 = vld [vmem:[#allocation10 + $0x8] sm:$0xf]
        %v906 = vld [vmem:[#allocation10 + $0xc] sm:$0xf]
        %v907 = vld [vmem:[#allocation10 + $0x10] sm:$0xf]
        %v908 = vld [vmem:[#allocation10 + $0x14] sm:$0xf]
        %v909 = vld [vmem:[#allocation10 + $0x18] sm:$0xf]
        %v910 = vld [vmem:[#allocation10 + $0x1c] sm:$0xf]
        %v911 = vld [vmem:[#allocation10 + $0x20] sm:$0xf]
        %v912 = vld [vmem:[#allocation10 + $0x24] sm:$0xf]
        %v913 = vld [vmem:[#allocation10 + $0x28] sm:$0xf]
        %v914 = vld [vmem:[#allocation10 + $0x2c] sm:$0xf]
        %v915 = vld [vmem:[#allocation10 + $0x30] sm:$0xf]
        %v916 = vld [vmem:[#allocation10 + $0x34] sm:$0xf]
        %v917 = vld [vmem:[#allocation10 + $0x38] sm:$0xf]
        %v918 = vld [vmem:[#allocation10 + $0x3c] sm:$0xf]
        %v919 = vld [vmem:[#allocation10 + $0x40] sm:$0xf]
        %v920 = vld [vmem:[#allocation10 + $0x44] sm:$0xf]
        %v921 = vld [vmem:[#allocation10 + $0x48] sm:$0xf]
        %v922 = vld [vmem:[#allocation10 + $0x4c] sm:$0xf]
        %v923 = vld [vmem:[#allocation10 + $0x50] sm:$0xf]
        %v924 = vld [vmem:[#allocation10 + $0x54] sm:$0xf]
        %v925 = vld [vmem:[#allocation10 + $0x58] sm:$0xf]
        %v926 = vld [vmem:[#allocation10 + $0x5c] sm:$0xf]
        %v927 = vld [vmem:[#allocation10 + $0x60] sm:$0xf]
        %v928 = vld [vmem:[#allocation10 + $0x64] sm:$0xf]
        %v929 = vld [vmem:[#allocation10 + $0x68] sm:$0xf]
        %v930 = vld [vmem:[#allocation10 + $0x6c] sm:$0xf]
        %v931 = vld [vmem:[#allocation10 + $0x70] sm:$0xf]
        %v932 = vld [vmem:[#allocation10 + $0x74] sm:$0xf]
        %v933 = vld [vmem:[#allocation10 + $0x78] sm:$0xf]
        %v934 = vld [vmem:[#allocation10 + $0x7c] sm:$0xf]
        %v935 = vld [vmem:[#allocation10 + $0x80] sm:$0xf]
        %v936 = vld [vmem:[#allocation10 + $0x84] sm:$0xf]
        %v937 = vld [vmem:[#allocation10 + $0x88] sm:$0xf]
        %v938 = vld [vmem:[#allocation10 + $0x8c] sm:$0xf]
        %v939 = vld [vmem:[#allocation10 + $0x90] sm:$0xf]
        %v940 = vld [vmem:[#allocation10 + $0x94] sm:$0xf]
        %v941 = vld [vmem:[#allocation10 + $0x98] sm:$0xf]
        %v942 = vld [vmem:[#allocation10 + $0x9c] sm:$0xf]
        %v943 = vld [vmem:[#allocation10 + $0xa0] sm:$0xf]
        %v944 = vld [vmem:[#allocation10 + $0xa4] sm:$0xf]
        %v945 = vld [vmem:[#allocation10 + $0xa8] sm:$0xf]
        %v946 = vld [vmem:[#allocation10 + $0xac] sm:$0xf]
        %v947 = vld [vmem:[#allocation10 + $0xb0] sm:$0xf]
        %v948 = vld [vmem:[#allocation10 + $0xb4] sm:$0xf]
        %v949 = vld [vmem:[#allocation10 + $0xb8] sm:$0xf]
        %v950 = vld [vmem:[#allocation10 + $0xbc] sm:$0xf]
        %v951 = vld [vmem:[#allocation10 + $0xc0] sm:$0xf]
        %v952 = vld [vmem:[#allocation10 + $0xc4] sm:$0xf]
        %v953 = vld [vmem:[#allocation10 + $0xc8] sm:$0xf]
        %v954 = vld [vmem:[#allocation10 + $0xcc] sm:$0xf]
        %v955 = vld [vmem:[#allocation10 + $0xd0] sm:$0xf]
        %v956 = vld [vmem:[#allocation10 + $0xd4] sm:$0xf]
        %v957 = vld [vmem:[#allocation10 + $0xd8] sm:$0xf]
        %v958 = vld [vmem:[#allocation10 + $0xdc] sm:$0xf]
        %v959 = vld [vmem:[#allocation10 + $0xe0] sm:$0xf]
        %v960 = vld [vmem:[#allocation10 + $0xe4] sm:$0xf]
        %v961 = vld [vmem:[#allocation10 + $0xe8] sm:$0xf]
        %v962 = vld [vmem:[#allocation10 + $0xec] sm:$0xf]
        %v963 = vld [vmem:[#allocation10 + $0xf0] sm:$0xf]
        %v964 = vld [vmem:[#allocation10 + $0xf4] sm:$0xf]
        %v965 = vld [vmem:[#allocation10 + $0xf8] sm:$0xf]
        %v966 = vld [vmem:[#allocation10 + $0xfc] sm:$0xf]
        %v967 = vlaneseq
        %v968 = vshrl.u32 %v967, 7
        %v969 = vsub.s32 3, %v968
        %v970 = vrot.slane %v370, %v969
        %v1035 = vunpack.c.l.b16 %v903
        %v1036 = vunpack.c.l.b16 %v904
        %v1037 = vunpack.c.l.b16 %v905
        %v1038 = vunpack.c.l.b16 %v906
        %v1039 = vunpack.c.l.b16 %v907
        %v1040 = vunpack.c.l.b16 %v908
        %v1041 = vunpack.c.l.b16 %v909
        %v1042 = vunpack.c.l.b16 %v910
        %v1043 = vunpack.c.l.b16 %v911
        %v1044 = vunpack.c.l.b16 %v912
        %v1045 = vunpack.c.l.b16 %v913
        %v1046 = vunpack.c.l.b16 %v914
        %v1047 = vunpack.c.l.b16 %v915
        %v1048 = vunpack.c.l.b16 %v916
        %v1049 = vunpack.c.l.b16 %v917
        %v1050 = vunpack.c.l.b16 %v918
        %v1051 = vunpack.c.l.b16 %v919
        %v1052 = vunpack.c.l.b16 %v920
        %v1053 = vunpack.c.l.b16 %v921
        %v1054 = vunpack.c.l.b16 %v922
        %v1055 = vunpack.c.l.b16 %v923
        %v1056 = vunpack.c.l.b16 %v924
        %v1057 = vunpack.c.l.b16 %v925
        %v1058 = vunpack.c.l.b16 %v926
        %v1059 = vunpack.c.l.b16 %v927
        %v1060 = vunpack.c.l.b16 %v928
        %v1061 = vunpack.c.l.b16 %v929
        %v1062 = vunpack.c.l.b16 %v930
        %v1063 = vunpack.c.l.b16 %v931
        %v1064 = vunpack.c.l.b16 %v932
        %v1065 = vunpack.c.l.b16 %v933
        %v1066 = vunpack.c.l.b16 %v934
        %v1067 = vunpack.c.l.b16 %v935
        %v1068 = vunpack.c.l.b16 %v936
        %v1069 = vunpack.c.l.b16 %v937
        %v1070 = vunpack.c.l.b16 %v938
        %v1071 = vunpack.c.l.b16 %v939
        %v1072 = vunpack.c.l.b16 %v940
        %v1073 = vunpack.c.l.b16 %v941
        %v1074 = vunpack.c.l.b16 %v942
        %v1075 = vunpack.c.l.b16 %v943
        %v1076 = vunpack.c.l.b16 %v944
        %v1077 = vunpack.c.l.b16 %v945
        %v1078 = vunpack.c.l.b16 %v946
        %v1079 = vunpack.c.l.b16 %v947
        %v1080 = vunpack.c.l.b16 %v948
        %v1081 = vunpack.c.l.b16 %v949
        %v1082 = vunpack.c.l.b16 %v950
        %v1083 = vunpack.c.l.b16 %v951
        %v1084 = vunpack.c.l.b16 %v952
        %v1085 = vunpack.c.l.b16 %v953
        %v1086 = vunpack.c.l.b16 %v954
        %v1087 = vunpack.c.l.b16 %v955
        %v1088 = vunpack.c.l.b16 %v956
        %v1089 = vunpack.c.l.b16 %v957
        %v1090 = vunpack.c.l.b16 %v958
        %v1091 = vunpack.c.l.b16 %v959
        %v1092 = vunpack.c.l.b16 %v960
        %v1093 = vunpack.c.l.b16 %v961
        %v1094 = vunpack.c.l.b16 %v962
        %v1095 = vunpack.c.l.b16 %v963
        %v1096 = vunpack.c.l.b16 %v964
        %v1097 = vunpack.c.l.b16 %v965
        %v1098 = vunpack.c.l.b16 %v966
        %v1099 = vpack.c.b16 %v1036, %v1035
        %v1100 = vpack.c.b16 %v1038, %v1037
        %v1101 = vpack.c.b16 %v1040, %v1039
        %v1102 = vpack.c.b16 %v1042, %v1041
        %v1103 = vpack.c.b16 %v1044, %v1043
        %v1104 = vpack.c.b16 %v1046, %v1045
        %v1105 = vpack.c.b16 %v1048, %v1047
        %v1106 = vpack.c.b16 %v1050, %v1049
        %v1107 = vpack.c.b16 %v1052, %v1051
        %v1108 = vpack.c.b16 %v1054, %v1053
        %v1109 = vpack.c.b16 %v1056, %v1055
        %v1110 = vpack.c.b16 %v1058, %v1057
        %v1111 = vpack.c.b16 %v1060, %v1059
        %v1112 = vpack.c.b16 %v1062, %v1061
        %v1113 = vpack.c.b16 %v1064, %v1063
        %v1114 = vpack.c.b16 %v1066, %v1065
        %v1115 = vpack.c.b16 %v1068, %v1067
        %v1116 = vpack.c.b16 %v1070, %v1069
        %v1117 = vpack.c.b16 %v1072, %v1071
        %v1118 = vpack.c.b16 %v1074, %v1073
        %v1119 = vpack.c.b16 %v1076, %v1075
        %v1120 = vpack.c.b16 %v1078, %v1077
        %v1121 = vpack.c.b16 %v1080, %v1079
        %v1122 = vpack.c.b16 %v1082, %v1081
        %v1123 = vpack.c.b16 %v1084, %v1083
        %v1124 = vpack.c.b16 %v1086, %v1085
        %v1125 = vpack.c.b16 %v1088, %v1087
        %v1126 = vpack.c.b16 %v1090, %v1089
        %v1127 = vpack.c.b16 %v1092, %v1091
        %v1128 = vpack.c.b16 %v1094, %v1093
        %v1129 = vpack.c.b16 %v1096, %v1095
        %v1130 = vpack.c.b16 %v1098, %v1097
        %1163 = vmatprep.subr.bf16.mxu0 0
        %1164 = vmatpush1.bf16.msra.mxu0 %v1106
        %1165 = vmatprep.subr.bf16.mxu0 0
        %1166 = vmatpush1.bf16.msra.mxu0 %v1105
        %1167 = vmatprep.subr.bf16.mxu0 0
        %1168 = vmatpush1.bf16.msra.mxu0 %v1104
        %1169 = vmatprep.subr.bf16.mxu0 0
        %1170 = vmatpush1.bf16.msra.mxu0 %v1103
        %1171 = vmatprep.subr.bf16.mxu0 0
        %1172 = vmatpush1.bf16.msra.mxu0 %v1102
        %1173 = vmatprep.subr.bf16.mxu0 0
        %1174 = vmatpush1.bf16.msra.mxu0 %v1101
        %1175 = vmatprep.subr.bf16.mxu0 0
        %1176 = vmatpush1.bf16.msra.mxu0 %v1100
        %1177 = vmatprep.subr.bf16.mxu0 0
        %1178 = vmatpush1.bf16.msra.mxu0 %v1099
        %1179 = vmatprep.subr.bf16.mxu0 0
        %1180 = vmatpush2.bf16.msra.mxu0 %v1114
        %1181 = vmatprep.subr.bf16.mxu0 0
        %1182 = vmatpush2.bf16.msra.mxu0 %v1113
        %1183 = vmatprep.subr.bf16.mxu0 0
        %1184 = vmatpush2.bf16.msra.mxu0 %v1112
        %1185 = vmatprep.subr.bf16.mxu0 0
        %1186 = vmatpush2.bf16.msra.mxu0 %v1111
        %1187 = vmatprep.subr.bf16.mxu0 0
        %1188 = vmatpush2.bf16.msra.mxu0 %v1110
        %1189 = vmatprep.subr.bf16.mxu0 0
        %1190 = vmatpush2.bf16.msra.mxu0 %v1109
        %1191 = vmatprep.subr.bf16.mxu0 0
        %1192 = vmatpush2.bf16.msra.mxu0 %v1108
        %1193 = vmatprep.subr.bf16.mxu0 0
        %1194 = vmatpush2.bf16.msra.mxu0 %v1107
        %1195 = vmatprep.mubr.bf16.mxu0 %v900
        %1196 = vmatmul.mubr.bf16.gmra.mxu0 %v899
        %v1197 = vpop.f32.mrf.mxu0
        %v1198 = vadd.f32 %v970, %v1197
        %v1199 = vpop.f32.mrf.mxu0
        %v1200 = vpop.f32.mrf.mxu0
        %v1201 = vadd.f32 %v970, %v1200
        %v1202 = vpop.f32.mrf.mxu0
        %1203 = vdwg.mxu0
        %1204 = vmatprep.subr.bf16.mxu0 0
        %1205 = vmatpush1.bf16.msra.mxu0 %v1122
        %1206 = vmatprep.subr.bf16.mxu0 0
        %1207 = vmatpush1.bf16.msra.mxu0 %v1121
        %1208 = vmatprep.subr.bf16.mxu0 0
        %1209 = vmatpush1.bf16.msra.mxu0 %v1120
        %1210 = vmatprep.subr.bf16.mxu0 0
        %1211 = vmatpush1.bf16.msra.mxu0 %v1119
        %1212 = vmatprep.subr.bf16.mxu0 0
        %1213 = vmatpush1.bf16.msra.mxu0 %v1118
        %1214 = vmatprep.subr.bf16.mxu0 0
        %1215 = vmatpush1.bf16.msra.mxu0 %v1117
        %1216 = vmatprep.subr.bf16.mxu0 0
        %1217 = vmatpush1.bf16.msra.mxu0 %v1116
        %1218 = vmatprep.subr.bf16.mxu0 0
        %1219 = vmatpush1.bf16.msra.mxu0 %v1115
        %1220 = vmatprep.subr.bf16.mxu0 0
        %1221 = vmatpush2.bf16.msra.mxu0 %v1130
        %1222 = vmatprep.subr.bf16.mxu0 0
        %1223 = vmatpush2.bf16.msra.mxu0 %v1129
        %1224 = vmatprep.subr.bf16.mxu0 0
        %1225 = vmatpush2.bf16.msra.mxu0 %v1128
        %1226 = vmatprep.subr.bf16.mxu0 0
        %1227 = vmatpush2.bf16.msra.mxu0 %v1127
        %1228 = vmatprep.subr.bf16.mxu0 0
        %1229 = vmatpush2.bf16.msra.mxu0 %v1126
        %1230 = vmatprep.subr.bf16.mxu0 0
        %1231 = vmatpush2.bf16.msra.mxu0 %v1125
        %1232 = vmatprep.subr.bf16.mxu0 0
        %1233 = vmatpush2.bf16.msra.mxu0 %v1124
        %1234 = vmatprep.subr.bf16.mxu0 0
        %1235 = vmatpush2.bf16.msra.mxu0 %v1123
        %1236 = vmatprep.mubr.bf16.mxu0 %v902
        %1237 = vmatmul.mubr.bf16.gmra.mxu0 %v901
        %v1238 = vpop.f32.mrf.mxu0
        %v1239 = vadd.f32 %v1198, %v1238
        %v1240 = vpop.f32.mrf.mxu0
        %v1241 = vpop.f32.mrf.mxu0
        %v1242 = vadd.f32 %v1201, %v1241
        %v1243 = vpop.f32.mrf.mxu0
        %1244 = vdwg.mxu0
        %v1245 = vadd.f32 %v530, %v1239
        %v1246 = vadd.f32 %v531, %v1242
        %1247 = vadd.xlane.f32.xlu0 %v1245
        %v1248 = vpop.xlane.xlu0 %1247
        %1249 = vadd.xlane.f32.xlu0 %v1246
        %v1250 = vpop.xlane.xlu0 %1249
        %v1251 = vmul.f32 %v1248, %v501
        %v1252 = vmul.f32 %v1250, %v501
        %v1253 = vsub.f32 %v1245, %v1251
        %v1254 = vsub.f32 %v1246, %v1252
        %v1255 = vmul.f32 %v1253, %v1253
        %v1256 = vmul.f32 %v1254, %v1254
        %1257 = vadd.xlane.f32.xlu0 %v1255
        %v1258 = vpop.xlane.xlu0 %1257
        %1259 = vadd.xlane.f32.xlu0 %v1256
        %v1260 = vpop.xlane.xlu0 %1259
        %v1261 = vmul.f32 %v1258, %v501
        %v1262 = vmul.f32 %v1260, %v501
        %v1263 = vadd.f32 %v1261, 1e-12
        %v1264 = vadd.f32 %v1262, 1e-12
        %v1265 = vrsqrt.pop %v1263
        %v1266 = vrsqrt.pop %v1264
        %v1267 = vmul.f32 %v1253, %v1265
        %v1268 = vmul.f32 %v1254, %v1266
        %v1269 = vlaneseq
        %v1270 = vshrl.u32 %v1269, 7
        %v1271 = vsub.s32 4, %v1270
        %v1272 = vrot.slane %v370, %v1271
        %v1273 = vmul.f32 %v1272, %v1267
        %v1274 = vmul.f32 %v1272, %v1268
        %v1275 = vlaneseq
        %v1276 = vshrl.u32 %v1275, 7
        %v1277 = vsub.s32 5, %v1276
        %v1278 = vrot.slane %v370, %v1277
        %v1279 = vadd.f32 %v1273, %v1278
        %v1280 = vadd.f32 %v1274, %v1278
        %1281 = vst [vmem:[%s365] sm:$0xff] %v1279
        %1282 = vst [vmem:[%s365 + $0x8] sm:$0xff] %v1280
        %s1283 = sand.u32 %s172, 1
        %s1284 = scalar_lea.sflag [#allocation4], %s1283
        %s1285 = sand.u32 %s172, 1
        %s1286 = smul.addr %s1285, 16
        %s1287 = scalar_lea.vmem [#allocation13], %s1286
        // Predicated region
        $region69: #{tpu_custom_call.1} parent=43 // pred_check
          %p1288 = pneg %p182
        $region70: #{tpu_custom_call.1} parent=43 // pred_check_branch
          %1290 = sbr.rel (%p1288) target = $region72
        $region71: #{tpu_custom_call.1} parent=43 // pred_region
          %s1291 = smul.u32 2, %s28
          %s1293 = ssub.s32 256, 256
          %1294 = vsyncadd %s1284, %s1293
          %s1295 = smul.addr %s1291, 128
          %s1296 = scalar_lea.hbm %s6, %s1295
          %s1297 = sshll.u32 %s1287, 4
          %s1298 = int_to_ptr.vmem [resolvable:$true] %s1297
          %1303 = dma.vmem_to_hbm [thread:$0]  %s1298, 256, %s1296, %s1284, 128, 128, 8
        $region72: #{tpu_custom_call.1} parent=43 // pred_fallthru
          _
      $region44: #{tpu_custom_call.1} parent=5 // pred_fallthru
        _
      %p1304 = scmp.le.s32.totalorder 2, %s23
      // Predicated region
      $region73: #{tpu_custom_call.1} parent=5 // pred_check
        %p1305 = pneg %p1304
      $region74: #{tpu_custom_call.1} parent=5 // pred_check_branch
        %1307 = sbr.rel (%p1305) target = $region76
      $region75: #{tpu_custom_call.1} parent=5 // pred_region
        %s1308 = ssub.s32 %s23, 2
        // Predicated region
        $region77: #{tpu_custom_call.1} parent=75 // pred_check
          %p1309 = pneg %p188
        $region78: #{tpu_custom_call.1} parent=75 // pred_check_branch
          %1311 = sbr.rel (%p1309) target = $region80
        $region79: #{tpu_custom_call.1} parent=75 // pred_region
          %s1312 = sand.u32 %s173, 1
          %s1313 = scalar_lea.sflag [#allocation4], %s1312
          %s1314 = sand.u32 %s173, 1
          %s1315 = smul.addr %s1314, 16
          %s1316 = scalar_lea.vmem [#allocation13], %s1315
          %1317 = dma.done %s1313, 256
        $region80: #{tpu_custom_call.1} parent=75 // pred_fallthru
          _
      $region76: #{tpu_custom_call.1} parent=5 // pred_fallthru
        _
    $region6: #{tpu_custom_call.1} parent=1 // loop_footer
      %s27 = sadd.s32 1, %s23
    $region7: #{tpu_custom_call.1} parent=1 // loop_footer_branch
      %22 = sbr.rel target = $region3
    $region8: #{tpu_custom_call.1} parent=1 // loop_exit
      _
    %1318 = vsyncpa [#allocation3], 1
    %s1319 = scalar_lea.sflag [#allocation3], 1
    %1320 = vsyncpa %s1319, 1
    %1321 = vsyncpa [#allocation6], 1
    %s1322 = scalar_lea.sflag [#allocation6], 1
    %1323 = vsyncpa %s1322, 1
    %1324 = vsyncpa [#allocation9], 1
    %1325 = vsyncpa [#allocation12], 1
    %1326 = vsyncpa [#allocation4], 1
    %s1327 = scalar_lea.sflag [#allocation4], 1
    %1328 = vsyncpa %s1327, 1

</llo_original>
